<compile_context>
chip_gen: v6e
topology: v6e:2x2x1
jax: 0.10.0
libtpu: 0.0.40
codegen_flags: <defaults>
</compile_context>

<pallas_src>
import math

import numpy as np
import jax
import jax.numpy as jnp
from jax.experimental import pallas as pl
from jax.experimental.pallas import tpu as pltpu

# ---------------- config (small synthetic shapes) ----------------
B = 2                    # batch
E = 32                   # embedding_dim
HID = (64, 32)           # hidden_dims
OUT = 32                 # output_dim (== embedding_dim so dot-product logits line up)
NVK = 5                  # num virtual kernels
TASKS = ("ctr", "cvr")
TASK_RANGES = ((0, 2), (1, 4))   # task_config: which VK experts each task gates over
NT = len(TASKS)
NE = NT                  # MMoE: num_experts == num_tasks
N_USER_FEAT = 3
N_ITEM_FEAT = 2
D_ITEM = N_ITEM_FEAT * E
VOCAB = 50
H1, H2 = HID
OUT_PAD = 128            # lane-dense packed output width: [logit | NVK vke weights | zeros]

assert OUT == E, "dot-product logits / VK gating require output_dim == embedding_dim"
for (s, e) in TASK_RANGES:
    assert e > s, "empty task range would make the masked softmax blow up"

SCALE = 1.0 / math.sqrt(E)


# ---------------- in-kernel helpers ----------------
def _softmax_lastdim(x):
    # exact reciprocal: denominators are tiny (rows of <=NVK lanes), accuracy > approx speed
    m = jnp.max(x, axis=-1, keepdims=True)
    ex = jnp.exp(x - m)
    return ex / jnp.sum(ex, axis=-1, keepdims=True)


# ---------------- fused MVKE forward kernel ----------------
def mvke_kernel(uid_ref, iid_ref, ut_ref, it_ref,
                iw1_ref, ib1_ref, iw2_ref, ib2_ref, iw3_ref, ib3_ref,
                s_ne_ref, t_ne_ref, pw_ref, pb_ref,
                vkt_ref, vkmask_ref, rep_ref,
                kw1_ref, kb1_ref, kw2_ref, kb2_ref, kw3_ref, kb3_ref,
                s_vk_ref, t_vk_ref,
                out_ref):
    f32 = jnp.float32
    bf16 = jnp.bfloat16

    vk_t = vkt_ref[...]                      # (E, NVK) bf16, pre-transposed virtual kernels
    s_vk = s_vk_ref[...]                     # (NVK, NVK*OUT) spread constant
    t_vk = t_vk_ref[...]                     # (NVK*OUT, OUT) block-sum constant

    # ---- embedding gather: SMEM scalar ids -> dynamic VMEM row loads (no one-hot matmuls) ----
    # user features stacked f-major into sublanes: rows [f*B + b]
    u_rows = []
    for f in range(N_USER_FEAT):
        for b in range(B):
            u_rows.append(ut_ref[pl.ds(f * VOCAB + uid_ref[b, f], 1), :])
    uf_all = jnp.concatenate(u_rows, axis=0).astype(bf16)                       # (F*B, E)

    # item aggregate: per batch row, feature embeddings concatenated along lanes
    x_rows = []
    for b in range(B):
        feats = [it_ref[pl.ds(f * VOCAB + iid_ref[b, f], 1), :] for f in range(N_ITEM_FEAT)]
        x_rows.append(jnp.concatenate(feats, axis=1))
    x = jnp.concatenate(x_rows, axis=0).astype(bf16)                            # (B, D_ITEM)

    # ---- item MMoE: all experts' layer-1 + all gate logits in ONE matmul ----
    z = jnp.dot(x, iw1_ref[...], preferred_element_type=f32) + ib1_ref[...]     # (B, NE*H1+NT*NE)
    h1 = jnp.maximum(z[:, :NE * H1], 0.0).astype(bf16)
    glog = z[:, NE * H1:]                                                       # (B, NT*NE) f32
    h2 = jnp.maximum(jnp.dot(h1, iw2_ref[...], preferred_element_type=f32)
                     + ib2_ref[...], 0.0).astype(bf16)
    eo = jnp.dot(h2, iw3_ref[...], preferred_element_type=f32) + ib3_ref[...]   # (B, NE*OUT) f32

    # task-folded gate softmax + expert mixture (rows [t*B + b], one pass for all tasks)
    glog_all = jnp.concatenate([glog[:, t * NE:(t + 1) * NE] for t in range(NT)], axis=0)
    g_all = _softmax_lastdim(glog_all)                                          # (NT*B, NE) f32
    gs_all = jnp.dot(g_all.astype(bf16), s_ne_ref[...], preferred_element_type=f32)  # (NT*B, NE*OUT)
    eo_stack = jnp.concatenate([eo] * NT, axis=0)                               # (NT*B, NE*OUT)
    item_emb_all = jnp.dot((gs_all * eo_stack).astype(bf16), t_ne_ref[...],
                           preferred_element_type=f32)                          # (NT*B, OUT)

    # task projections: one wide matmul, then pick each task's diagonal block
    proj_wide = (jnp.dot(item_emb_all.astype(bf16), pw_ref[...], preferred_element_type=f32)
                 + pb_ref[...])                                                 # (NT*B, NT*E)
    q_all = jnp.concatenate(
        [proj_wide[t * B:(t + 1) * B, t * E:(t + 1) * E] for t in range(NT)], axis=0)  # (NT*B, E)

    # ---- MVKE user side: VK attention with all feature slots stacked in sublanes ----
    sc_all = jnp.dot(uf_all, vk_t, preferred_element_type=f32) * SCALE          # (F*B, NVK)
    m = sc_all[0:B]
    for f in range(1, N_USER_FEAT):
        m = jnp.maximum(m, sc_all[f * B:(f + 1) * B])
    ex_all = jnp.exp(sc_all - jnp.concatenate([m] * N_USER_FEAT, axis=0))       # (F*B, NVK)
    denom = ex_all[0:B]
    for f in range(1, N_USER_FEAT):
        denom = denom + ex_all[f * B:(f + 1) * B]
    att_all = ex_all * jnp.concatenate([1.0 / denom] * N_USER_FEAT, axis=0)     # (F*B, NVK) f32

    # ctx[b, k*E+e] = sum_f att[b,f,k] * uf[b,f,e]  (k-major lanes, matches block-diag weights)
    att_sp = jnp.dot(att_all.astype(bf16), s_vk, preferred_element_type=f32)    # (F*B, NVK*E)
    uf_rep = jnp.dot(uf_all, rep_ref[...], preferred_element_type=f32)          # (F*B, NVK*E)
    term = att_sp * uf_rep
    ctx = term[0:B]
    for f in range(1, N_USER_FEAT):
        ctx = ctx + term[f * B:(f + 1) * B]                                     # (B, NVK*E)

    # all NVK virtual-kernel expert MLPs as three block-diagonal, lane-dense matmuls
    u1 = jnp.maximum(jnp.dot(ctx.astype(bf16), kw1_ref[...], preferred_element_type=f32)
                     + kb1_ref[...], 0.0)
    u2 = jnp.maximum(jnp.dot(u1.astype(bf16), kw2_ref[...], preferred_element_type=f32)
                     + kb2_ref[...], 0.0)
    vke = jnp.dot(u2.astype(bf16), kw3_ref[...], preferred_element_type=f32) + kb3_ref[...]  # (B, NVK*OUT)

    # ---- per-task VK gating + logits, task-folded, one lane-dense output slab ----
    sc_t = (jnp.dot(q_all.astype(bf16), vk_t, preferred_element_type=f32) * SCALE
            + vkmask_ref[...])                                                  # (NT*B, NVK), f32 mask
    w_all = _softmax_lastdim(sc_t)                                              # (NT*B, NVK)
    ws_all = jnp.dot(w_all.astype(bf16), s_vk, preferred_element_type=f32)      # (NT*B, NVK*OUT)
    vke_stack = jnp.concatenate([vke] * NT, axis=0)                             # (NT*B, NVK*OUT)
    u_all = jnp.dot((ws_all * vke_stack).astype(bf16), t_vk,
                    preferred_element_type=f32)                                 # (NT*B, OUT)
    logit = jnp.sum(u_all * item_emb_all, axis=1, keepdims=True)                # (NT*B, 1)

    pad = jnp.zeros((NT * B, OUT_PAD - 1 - NVK), f32)
    out_ref[...] = jnp.concatenate([logit, w_all, pad], axis=1)                 # (NT*B, OUT_PAD)


# ---------------- wrapper ----------------
PACKED_ORDER = ("user_tab", "item_tab",
                "iw1", "ib1", "iw2", "ib2", "iw3", "ib3",
                "s_ne", "t_ne", "pw", "pb",
                "vk_t", "vk_mask", "rep_vk",
                "kw1", "kb1", "kw2", "kb2", "kw3", "kb3",
                "s_vk", "t_vk")


def mvke_forward(user_ids, item_ids, packed):
    """user_ids: (B, N_USER_FEAT) int32, item_ids: (B, N_ITEM_FEAT) int32."""
    smem = pl.BlockSpec(memory_space=pltpu.MemorySpace.SMEM)
    vmem = pl.BlockSpec(memory_space=pltpu.MemorySpace.VMEM)
    slab = pl.pallas_call(
        mvke_kernel,
        out_shape=jax.ShapeDtypeStruct((NT * B, OUT_PAD), jnp.float32),
        in_specs=[smem, smem] + [vmem] * len(PACKED_ORDER),
        out_specs=vmem,
    )(user_ids, item_ids, *[packed[k] for k in PACKED_ORDER])

    slab = slab.reshape(NT, B, OUT_PAD)      # free wrapper-side layout plumbing
    predictions = {task: slab[t, :, 0:1] for t, task in enumerate(TASKS)}
    vke_weights = {task: slab[t, :, 1:1 + NVK] for t, task in enumerate(TASKS)}
    return predictions, {"vke_weights": vke_weights}


# ---------------- parameter packing (lane-dense / block-diagonal, bf16 weights) ----------------
def _block_diag(blocks):
    n_rows = sum(b.shape[0] for b in blocks)
    n_cols = sum(b.shape[1] for b in blocks)
    out = jnp.zeros((n_rows, n_cols), blocks[0].dtype)
    r = c = 0
    for blk in blocks:
        out = out.at[r:r + blk.shape[0], c:c + blk.shape[1]].set(blk)
        r += blk.shape[0]
        c += blk.shape[1]
    return out


def pack_params(p):
    f32, bf16 = jnp.float32, jnp.bfloat16
    packed = {}
    # embedding tables flattened to (F*VOCAB, E) f32 rows, gathered in-kernel by dynamic index
    packed["user_tab"] = p["user_tables"].reshape(N_USER_FEAT * VOCAB, E)
    packed["item_tab"] = p["item_tables"].reshape(N_ITEM_FEAT * VOCAB, E)
    # item MMoE: expert layer-1 weights concatenated along outputs + gate weights appended
    packed["iw1"] = jnp.concatenate([p["ew1"][e] for e in range(NE)]
                                    + [p["gw"][t] for t in range(NT)], axis=1).astype(bf16)
    packed["ib1"] = jnp.concatenate([p["eb1"][e] for e in range(NE)]
                                    + [p["gb"][t] for t in range(NT)], axis=0)[None, :]
    packed["iw2"] = _block_diag([p["ew2"][e] for e in range(NE)]).astype(bf16)   # (NE*H1, NE*H2)
    packed["ib2"] = jnp.concatenate([p["eb2"][e] for e in range(NE)], axis=0)[None, :]
    packed["iw3"] = _block_diag([p["ew3"][e] for e in range(NE)]).astype(bf16)   # (NE*H2, NE*OUT)
    packed["ib3"] = jnp.concatenate([p["eb3"][e] for e in range(NE)], axis=0)[None, :]
    # constant spread / block-sum matrices (0/1 => exact in bf16)
    packed["s_ne"] = jnp.kron(jnp.eye(NE, dtype=f32), jnp.ones((1, OUT), f32)).astype(bf16)
    packed["t_ne"] = jnp.kron(jnp.ones((NE, 1), f32), jnp.eye(OUT, dtype=f32)).astype(bf16)
    # per-task projections concatenated along lanes (diag block picked per task in-kernel)
    packed["pw"] = jnp.concatenate([p["pw"][t] for t in range(NT)], axis=1).astype(bf16)  # (E, NT*E)
    packed["pb"] = jnp.concatenate([p["pb"][t] for t in range(NT)], axis=0)[None, :]
    # virtual kernels (pre-transposed) + hoisted additive task-range mask (f32, row per (t,b))
    packed["vk_t"] = p["vk"].T.astype(bf16)                                      # (E, NVK)
    kidx = jnp.arange(NVK)
    mask_t = jnp.stack(
        [jnp.where((kidx >= s) & (kidx < e), 0.0, -1e30) for (s, e) in TASK_RANGES]).astype(f32)
    packed["vk_mask"] = jnp.repeat(mask_t, B, axis=0)                            # (NT*B, NVK)
    # replicate constant uf -> [uf]*NVK via one matmul
    packed["rep_vk"] = jnp.kron(jnp.ones((1, NVK), f32), jnp.eye(E, dtype=f32)).astype(bf16)  # (E, NVK*E)
    # NVK virtual-kernel expert MLPs, block-diagonal (k on the lane axis)
    packed["kw1"] = _block_diag([p["kw1"][k] for k in range(NVK)]).astype(bf16)  # (NVK*E, NVK*H1)
    packed["kb1"] = jnp.concatenate([p["kb1"][k] for k in range(NVK)], axis=0)[None, :]
    packed["kw2"] = _block_diag([p["kw2"][k] for k in range(NVK)]).astype(bf16)  # (NVK*H1, NVK*H2)
    packed["kb2"] = jnp.concatenate([p["kb2"][k] for k in range(NVK)], axis=0)[None, :]
    packed["kw3"] = _block_diag([p["kw3"][k] for k in range(NVK)]).astype(bf16)  # (NVK*H2, NVK*OUT)
    packed["kb3"] = jnp.concatenate([p["kb3"][k] for k in range(NVK)], axis=0)[None, :]
    packed["s_vk"] = jnp.kron(jnp.eye(NVK, dtype=f32), jnp.ones((1, OUT), f32)).astype(bf16)
    packed["t_vk"] = jnp.kron(jnp.ones((NVK, 1), f32), jnp.eye(OUT, dtype=f32)).astype(bf16)
    return packed


# ---------------- deterministic parameter init (module-shaped params) ----------------
def init_params(key):
    keys = iter(jax.random.split(key, 64))

    def w(shape, scale=0.05):
        return jax.random.normal(next(keys), shape, jnp.float32) * scale

    p = {}
    p["user_tables"] = w((N_USER_FEAT, VOCAB, E))
    p["item_tables"] = w((N_ITEM_FEAT, VOCAB, E))
    # MMoE experts (stacked over NE)
    p["ew1"] = w((NE, D_ITEM, H1)); p["eb1"] = jnp.zeros((NE, H1), jnp.float32)
    p["ew2"] = w((NE, H1, H2));     p["eb2"] = jnp.zeros((NE, H2), jnp.float32)
    p["ew3"] = w((NE, H2, OUT));    p["eb3"] = jnp.zeros((NE, OUT), jnp.float32)
    # MMoE gates + per-task item projections (stacked over NT)
    p["gw"] = w((NT, D_ITEM, NE));  p["gb"] = jnp.zeros((NT, NE), jnp.float32)
    p["pw"] = w((NT, E, E));        p["pb"] = jnp.zeros((NT, E), jnp.float32)
    # MVKE virtual kernels + per-kernel experts (stacked over NVK, shared_experts=False)
    p["vk"] = w((NVK, E))
    p["kw1"] = w((NVK, E, H1));   p["kb1"] = jnp.zeros((NVK, H1), jnp.float32)
    p["kw2"] = w((NVK, H1, H2));  p["kb2"] = jnp.zeros((NVK, H2), jnp.float32)
    p["kw3"] = w((NVK, H2, OUT)); p["kb3"] = jnp.zeros((NVK, OUT), jnp.float32)
    return p


# ---------------- pure-JAX reference (same semantics, for correctness check) ----------------
def mvke_reference(user_ids, item_ids, p):
    uf = jnp.stack([p["user_tables"][f][user_ids[:, f]] for f in range(N_USER_FEAT)], axis=1)
    x = jnp.concatenate([p["item_tables"][f][item_ids[:, f]] for f in range(N_ITEM_FEAT)], axis=-1)

    def mlp(h, w1, b1, w2, b2, w3, b3):
        h = jax.nn.relu(h @ w1 + b1)
        h = jax.nn.relu(h @ w2 + b2)
        return h @ w3 + b3

    eo = jnp.stack([mlp(x, p["ew1"][e], p["eb1"][e], p["ew2"][e], p["eb2"][e],
                        p["ew3"][e], p["eb3"][e]) for e in range(NE)], axis=1)      # (B, NE, OUT)
    item_emb, item_proj = [], []
    for t in range(NT):
        g = jax.nn.softmax(x @ p["gw"][t] + p["gb"][t], axis=-1)
        emb = jnp.einsum("bn,bno->bo", g, eo)
        item_emb.append(emb)
        item_proj.append(emb @ p["pw"][t] + p["pb"][t])

    sc = jnp.einsum("bfe,ke->bfk", uf, p["vk"]) * SCALE
    att = jax.nn.softmax(sc, axis=1)
    ctx = jnp.einsum("bfk,bfe->bke", att, uf)                                       # (B, NVK, E)
    vke = jnp.stack([mlp(ctx[:, k], p["kw1"][k], p["kb1"][k], p["kw2"][k], p["kb2"][k],
                         p["kw3"][k], p["kb3"][k]) for k in range(NVK)], axis=1)    # (B, NVK, OUT)

    kidx = jnp.arange(NVK)
    preds, vkw = {}, {}
    for t, task in enumerate(TASKS):
        s, e = TASK_RANGES[t]
        g = item_proj[t] @ p["vk"].T * SCALE
        g = jnp.where((kidx >= s) & (kidx < e), g, -1e30)
        wgt = jax.nn.softmax(g, axis=-1)
        u = jnp.einsum("bk,bko->bo", wgt, vke)
        preds[task] = jnp.sum(u * item_emb[t], axis=-1, keepdims=True)
        vkw[task] = wgt
    return preds, vkw


if __name__ == "__main__":
    root = jax.random.PRNGKey(0)
    k_params, k_uid, k_iid = jax.random.split(root, 3)
    params = init_params(k_params)
    packed = pack_params(params)

    user_ids = jax.random.randint(k_uid, (B, N_USER_FEAT), 0, VOCAB, dtype=jnp.int32)
    item_ids = jax.random.randint(k_iid, (B, N_ITEM_FEAT), 0, VOCAB, dtype=jnp.int32)

    fwd = jax.jit(mvke_forward)
    predictions, aux = fwd(user_ids, item_ids, packed)
    jax.block_until_ready((predictions, aux))

    # shape checks
    assert set(predictions.keys()) == set(TASKS)
    for task in TASKS:
        assert predictions[task].shape == (B, 1)
        assert aux["vke_weights"][task].shape == (B, NVK)

    # numerical check vs pure-JAX f32 reference (tolerance accounts for bf16 matmul operands)
    ref_preds, ref_vkw = mvke_reference(user_ids, item_ids, params)
    for task in TASKS:
        np.testing.assert_allclose(np.asarray(predictions[task]), np.asarray(ref_preds[task]),
                                   rtol=5e-2, atol=5e-3)
        np.testing.assert_allclose(np.asarray(aux["vke_weights"][task]), np.asarray(ref_vkw[task]),
                                   rtol=5e-2, atol=5e-3)

    print("KERNEL_OK")
</pallas_src>

<mosaic_0001>
module attributes {stable_mosaic.version = 11 : i64} {
  func.func @mvke_kernel(%arg0: memref<2x3xi32, #tpu.memory_space<smem>>, %arg1: memref<2x2xi32, #tpu.memory_space<smem>>, %arg2: memref<150x32xf32, #tpu.memory_space<vmem>>, %arg3: memref<100x32xf32, #tpu.memory_space<vmem>>, %arg4: memref<64x132xbf16, #tpu.memory_space<vmem>>, %arg5: memref<1x132xf32, #tpu.memory_space<vmem>>, %arg6: memref<128x64xbf16, #tpu.memory_space<vmem>>, %arg7: memref<1x64xf32, #tpu.memory_space<vmem>>, %arg8: memref<64x64xbf16, #tpu.memory_space<vmem>>, %arg9: memref<1x64xf32, #tpu.memory_space<vmem>>, %arg10: memref<2x64xbf16, #tpu.memory_space<vmem>>, %arg11: memref<64x32xbf16, #tpu.memory_space<vmem>>, %arg12: memref<32x64xbf16, #tpu.memory_space<vmem>>, %arg13: memref<1x64xf32, #tpu.memory_space<vmem>>, %arg14: memref<32x5xbf16, #tpu.memory_space<vmem>>, %arg15: memref<4x5xf32, #tpu.memory_space<vmem>>, %arg16: memref<32x160xbf16, #tpu.memory_space<vmem>>, %arg17: memref<160x320xbf16, #tpu.memory_space<vmem>>, %arg18: memref<1x320xf32, #tpu.memory_space<vmem>>, %arg19: memref<320x160xbf16, #tpu.memory_space<vmem>>, %arg20: memref<1x160xf32, #tpu.memory_space<vmem>>, %arg21: memref<160x160xbf16, #tpu.memory_space<vmem>>, %arg22: memref<1x160xf32, #tpu.memory_space<vmem>>, %arg23: memref<5x160xbf16, #tpu.memory_space<vmem>>, %arg24: memref<160x32xbf16, #tpu.memory_space<vmem>>, %arg25: memref<4x128xf32, #tpu.memory_space<vmem>>) attributes {dimension_semantics = [], scalar_prefetch = 0 : i64, scratch_operands = 0 : i64, tpu.core_type = #tpu.core_type<tc>} {
    %c0 = arith.constant 0 : index
    %c0_0 = arith.constant 0 : index
    %0 = vector.load %arg14[%c0, %c0_0] : memref<32x5xbf16, #tpu.memory_space<vmem>>, vector<32x5xbf16>
    %c0_1 = arith.constant 0 : index
    %c0_2 = arith.constant 0 : index
    %1 = vector.load %arg23[%c0_1, %c0_2] : memref<5x160xbf16, #tpu.memory_space<vmem>>, vector<5x160xbf16>
    %c0_3 = arith.constant 0 : index
    %c0_4 = arith.constant 0 : index
    %2 = vector.load %arg24[%c0_3, %c0_4] : memref<160x32xbf16, #tpu.memory_space<vmem>>, vector<160x32xbf16>
    %c0_5 = arith.constant 0 : index
    %c0_6 = arith.constant 0 : index
    %3 = memref.load %arg0[%c0_5, %c0_6] : memref<2x3xi32, #tpu.memory_space<smem>>
    %c0_i32 = arith.constant 0 : i32
    %4 = arith.addi %c0_i32, %3 : i32
    %5 = arith.index_cast %4 : i32 to index
    %c0_7 = arith.constant 0 : index
    %6 = vector.load %arg2[%5, %c0_7] : memref<150x32xf32, #tpu.memory_space<vmem>>, vector<1x32xf32>
    %c1 = arith.constant 1 : index
    %c0_8 = arith.constant 0 : index
    %7 = memref.load %arg0[%c1, %c0_8] : memref<2x3xi32, #tpu.memory_space<smem>>
    %c0_i32_9 = arith.constant 0 : i32
    %8 = arith.addi %c0_i32_9, %7 : i32
    %9 = arith.index_cast %8 : i32 to index
    %c0_10 = arith.constant 0 : index
    %10 = vector.load %arg2[%9, %c0_10] : memref<150x32xf32, #tpu.memory_space<vmem>>, vector<1x32xf32>
    %c0_11 = arith.constant 0 : index
    %c1_12 = arith.constant 1 : index
    %11 = memref.load %arg0[%c0_11, %c1_12] : memref<2x3xi32, #tpu.memory_space<smem>>
    %c50_i32 = arith.constant 50 : i32
    %12 = arith.addi %c50_i32, %11 : i32
    %13 = arith.index_cast %12 : i32 to index
    %c0_13 = arith.constant 0 : index
    %14 = vector.load %arg2[%13, %c0_13] : memref<150x32xf32, #tpu.memory_space<vmem>>, vector<1x32xf32>
    %c1_14 = arith.constant 1 : index
    %c1_15 = arith.constant 1 : index
    %15 = memref.load %arg0[%c1_14, %c1_15] : memref<2x3xi32, #tpu.memory_space<smem>>
    %c50_i32_16 = arith.constant 50 : i32
    %16 = arith.addi %c50_i32_16, %15 : i32
    %17 = arith.index_cast %16 : i32 to index
    %c0_17 = arith.constant 0 : index
    %18 = vector.load %arg2[%17, %c0_17] : memref<150x32xf32, #tpu.memory_space<vmem>>, vector<1x32xf32>
    %c0_18 = arith.constant 0 : index
    %c2 = arith.constant 2 : index
    %19 = memref.load %arg0[%c0_18, %c2] : memref<2x3xi32, #tpu.memory_space<smem>>
    %c100_i32 = arith.constant 100 : i32
    %20 = arith.addi %c100_i32, %19 : i32
    %21 = arith.index_cast %20 : i32 to index
    %c0_19 = arith.constant 0 : index
    %22 = vector.load %arg2[%21, %c0_19] : memref<150x32xf32, #tpu.memory_space<vmem>>, vector<1x32xf32>
    %c1_20 = arith.constant 1 : index
    %c2_21 = arith.constant 2 : index
    %23 = memref.load %arg0[%c1_20, %c2_21] : memref<2x3xi32, #tpu.memory_space<smem>>
    %c100_i32_22 = arith.constant 100 : i32
    %24 = arith.addi %c100_i32_22, %23 : i32
    %25 = arith.index_cast %24 : i32 to index
    %c0_23 = arith.constant 0 : index
    %26 = vector.load %arg2[%25, %c0_23] : memref<150x32xf32, #tpu.memory_space<vmem>>, vector<1x32xf32>
    %27 = tpu.concatenate %6, %10, %14, %18, %22, %26 in 0 : vector<1x32xf32>, vector<1x32xf32>, vector<1x32xf32>, vector<1x32xf32>, vector<1x32xf32>, vector<1x32xf32> -> vector<6x32xf32>
    %28 = arith.truncf %27 : vector<6x32xf32> to vector<6x32xbf16>
    %c0_24 = arith.constant 0 : index
    %c0_25 = arith.constant 0 : index
    %29 = memref.load %arg1[%c0_24, %c0_25] : memref<2x2xi32, #tpu.memory_space<smem>>
    %c0_i32_26 = arith.constant 0 : i32
    %30 = arith.addi %c0_i32_26, %29 : i32
    %31 = arith.index_cast %30 : i32 to index
    %c0_27 = arith.constant 0 : index
    %32 = vector.load %arg3[%31, %c0_27] : memref<100x32xf32, #tpu.memory_space<vmem>>, vector<1x32xf32>
    %c0_28 = arith.constant 0 : index
    %c1_29 = arith.constant 1 : index
    %33 = memref.load %arg1[%c0_28, %c1_29] : memref<2x2xi32, #tpu.memory_space<smem>>
    %c50_i32_30 = arith.constant 50 : i32
    %34 = arith.addi %c50_i32_30, %33 : i32
    %35 = arith.index_cast %34 : i32 to index
    %c0_31 = arith.constant 0 : index
    %36 = vector.load %arg3[%35, %c0_31] : memref<100x32xf32, #tpu.memory_space<vmem>>, vector<1x32xf32>
    %37 = tpu.concatenate %32, %36 in 1 : vector<1x32xf32>, vector<1x32xf32> -> vector<1x64xf32>
    %c1_32 = arith.constant 1 : index
    %c0_33 = arith.constant 0 : index
    %38 = memref.load %arg1[%c1_32, %c0_33] : memref<2x2xi32, #tpu.memory_space<smem>>
    %c0_i32_34 = arith.constant 0 : i32
    %39 = arith.addi %c0_i32_34, %38 : i32
    %40 = arith.index_cast %39 : i32 to index
    %c0_35 = arith.constant 0 : index
    %41 = vector.load %arg3[%40, %c0_35] : memref<100x32xf32, #tpu.memory_space<vmem>>, vector<1x32xf32>
    %c1_36 = arith.constant 1 : index
    %c1_37 = arith.constant 1 : index
    %42 = memref.load %arg1[%c1_36, %c1_37] : memref<2x2xi32, #tpu.memory_space<smem>>
    %c50_i32_38 = arith.constant 50 : i32
    %43 = arith.addi %c50_i32_38, %42 : i32
    %44 = arith.index_cast %43 : i32 to index
    %c0_39 = arith.constant 0 : index
    %45 = vector.load %arg3[%44, %c0_39] : memref<100x32xf32, #tpu.memory_space<vmem>>, vector<1x32xf32>
    %46 = tpu.concatenate %41, %45 in 1 : vector<1x32xf32>, vector<1x32xf32> -> vector<1x64xf32>
    %47 = tpu.concatenate %37, %46 in 0 : vector<1x64xf32>, vector<1x64xf32> -> vector<2x64xf32>
    %48 = arith.truncf %47 : vector<2x64xf32> to vector<2x64xbf16>
    %c0_40 = arith.constant 0 : index
    %c0_41 = arith.constant 0 : index
    %49 = vector.load %arg4[%c0_40, %c0_41] : memref<64x132xbf16, #tpu.memory_space<vmem>>, vector<64x132xbf16>
    %cst = arith.constant dense<0.000000e+00> : vector<2x132xf32>
    %50 = tpu.matmul %48, %49, %cst {dimension_numbers = #tpu.dot_dimension_numbers<[1], [0], [0], [1], [0, 0, 1, 1], [], []>} : vector<2x64xbf16>, vector<64x132xbf16>, vector<2x132xf32> -> vector<2x132xf32>
    %c0_42 = arith.constant 0 : index
    %c0_43 = arith.constant 0 : index
    %51 = vector.load %arg5[%c0_42, %c0_43] : memref<1x132xf32, #tpu.memory_space<vmem>>, vector<1x132xf32>
    %52 = vector.broadcast %51 : vector<1x132xf32> to vector<2x132xf32>
    %53 = arith.addf %50, %52 : vector<2x132xf32>
    %54 = vector.extract_strided_slice %53 {offsets = [0, 0], sizes = [2, 128], strides = [1, 1]} : vector<2x132xf32> to vector<2x128xf32>
    %cst_44 = arith.constant 0.000000e+00 : f32
    %55 = vector.broadcast %cst_44 : f32 to vector<2x128xf32>
    %56 = arith.maximumf %54, %55 : vector<2x128xf32>
    %57 = arith.truncf %56 : vector<2x128xf32> to vector<2x128xbf16>
    %58 = vector.extract_strided_slice %53 {offsets = [0, 128], sizes = [2, 4], strides = [1, 1]} : vector<2x132xf32> to vector<2x4xf32>
    %c0_45 = arith.constant 0 : index
    %c0_46 = arith.constant 0 : index
    %59 = vector.load %arg6[%c0_45, %c0_46] : memref<128x64xbf16, #tpu.memory_space<vmem>>, vector<128x64xbf16>
    %cst_47 = arith.constant dense<0.000000e+00> : vector<2x64xf32>
    %60 = tpu.matmul %57, %59, %cst_47 {dimension_numbers = #tpu.dot_dimension_numbers<[1], [0], [0], [1], [0, 0, 1, 1], [], []>} : vector<2x128xbf16>, vector<128x64xbf16>, vector<2x64xf32> -> vector<2x64xf32>
    %c0_48 = arith.constant 0 : index
    %c0_49 = arith.constant 0 : index
    %61 = vector.load %arg7[%c0_48, %c0_49] : memref<1x64xf32, #tpu.memory_space<vmem>>, vector<1x64xf32>
    %62 = vector.broadcast %61 : vector<1x64xf32> to vector<2x64xf32>
    %63 = arith.addf %60, %62 : vector<2x64xf32>
    %cst_50 = arith.constant 0.000000e+00 : f32
    %64 = vector.broadcast %cst_50 : f32 to vector<2x64xf32>
    %65 = arith.maximumf %63, %64 : vector<2x64xf32>
    %66 = arith.truncf %65 : vector<2x64xf32> to vector<2x64xbf16>
    %c0_51 = arith.constant 0 : index
    %c0_52 = arith.constant 0 : index
    %67 = vector.load %arg8[%c0_51, %c0_52] : memref<64x64xbf16, #tpu.memory_space<vmem>>, vector<64x64xbf16>
    %cst_53 = arith.constant dense<0.000000e+00> : vector<2x64xf32>
    %68 = tpu.matmul %66, %67, %cst_53 {dimension_numbers = #tpu.dot_dimension_numbers<[1], [0], [0], [1], [0, 0, 1, 1], [], []>} : vector<2x64xbf16>, vector<64x64xbf16>, vector<2x64xf32> -> vector<2x64xf32>
    %c0_54 = arith.constant 0 : index
    %c0_55 = arith.constant 0 : index
    %69 = vector.load %arg9[%c0_54, %c0_55] : memref<1x64xf32, #tpu.memory_space<vmem>>, vector<1x64xf32>
    %70 = vector.broadcast %69 : vector<1x64xf32> to vector<2x64xf32>
    %71 = arith.addf %68, %70 : vector<2x64xf32>
    %72 = vector.extract_strided_slice %58 {offsets = [0, 0], sizes = [2, 2], strides = [1, 1]} : vector<2x4xf32> to vector<2x2xf32>
    %73 = vector.extract_strided_slice %58 {offsets = [0, 2], sizes = [2, 2], strides = [1, 1]} : vector<2x4xf32> to vector<2x2xf32>
    %74 = tpu.concatenate %72, %73 in 0 : vector<2x2xf32>, vector<2x2xf32> -> vector<4x2xf32>
    %cst_56 = arith.constant dense<0xFF800000> : vector<4xf32>
    %75 = vector.multi_reduction <maximumf>, %74, %cst_56 [1] : vector<4x2xf32> to vector<4xf32>
    %76 = vector.shape_cast %75 : vector<4xf32> to vector<4x1xf32>
    %77 = vector.broadcast %76 : vector<4x1xf32> to vector<4x2xf32>
    %78 = arith.subf %74, %77 : vector<4x2xf32>
    %79 = math.exp %78 : vector<4x2xf32>
    %cst_57 = arith.constant dense<0.000000e+00> : vector<4xf32>
    %80 = vector.multi_reduction <add>, %79, %cst_57 [1] : vector<4x2xf32> to vector<4xf32>
    %81 = vector.shape_cast %80 : vector<4xf32> to vector<4x1xf32>
    %82 = vector.broadcast %81 : vector<4x1xf32> to vector<4x2xf32>
    %83 = arith.divf %79, %82 : vector<4x2xf32>
    %84 = arith.truncf %83 : vector<4x2xf32> to vector<4x2xbf16>
    %c0_58 = arith.constant 0 : index
    %c0_59 = arith.constant 0 : index
    %85 = vector.load %arg10[%c0_58, %c0_59] : memref<2x64xbf16, #tpu.memory_space<vmem>>, vector<2x64xbf16>
    %cst_60 = arith.constant dense<0.000000e+00> : vector<4x64xf32>
    %86 = tpu.matmul %84, %85, %cst_60 {dimension_numbers = #tpu.dot_dimension_numbers<[1], [0], [0], [1], [0, 0, 1, 1], [], []>} : vector<4x2xbf16>, vector<2x64xbf16>, vector<4x64xf32> -> vector<4x64xf32>
    %87 = tpu.concatenate %71, %71 in 0 : vector<2x64xf32>, vector<2x64xf32> -> vector<4x64xf32>
    %88 = arith.mulf %86, %87 : vector<4x64xf32>
    %89 = arith.truncf %88 : vector<4x64xf32> to vector<4x64xbf16>
    %c0_61 = arith.constant 0 : index
    %c0_62 = arith.constant 0 : index
    %90 = vector.load %arg11[%c0_61, %c0_62] : memref<64x32xbf16, #tpu.memory_space<vmem>>, vector<64x32xbf16>
    %cst_63 = arith.constant dense<0.000000e+00> : vector<4x32xf32>
    %91 = tpu.matmul %89, %90, %cst_63 {dimension_numbers = #tpu.dot_dimension_numbers<[1], [0], [0], [1], [0, 0, 1, 1], [], []>} : vector<4x64xbf16>, vector<64x32xbf16>, vector<4x32xf32> -> vector<4x32xf32>
    %92 = arith.truncf %91 : vector<4x32xf32> to vector<4x32xbf16>
    %c0_64 = arith.constant 0 : index
    %c0_65 = arith.constant 0 : index
    %93 = vector.load %arg12[%c0_64, %c0_65] : memref<32x64xbf16, #tpu.memory_space<vmem>>, vector<32x64xbf16>
    %cst_66 = arith.constant dense<0.000000e+00> : vector<4x64xf32>
    %94 = tpu.matmul %92, %93, %cst_66 {dimension_numbers = #tpu.dot_dimension_numbers<[1], [0], [0], [1], [0, 0, 1, 1], [], []>} : vector<4x32xbf16>, vector<32x64xbf16>, vector<4x64xf32> -> vector<4x64xf32>
    %c0_67 = arith.constant 0 : index
    %c0_68 = arith.constant 0 : index
    %95 = vector.load %arg13[%c0_67, %c0_68] : memref<1x64xf32, #tpu.memory_space<vmem>>, vector<1x64xf32>
    %96 = vector.broadcast %95 : vector<1x64xf32> to vector<4x64xf32>
    %97 = arith.addf %94, %96 : vector<4x64xf32>
    %98 = vector.extract_strided_slice %97 {offsets = [0, 0], sizes = [2, 32], strides = [1, 1]} : vector<4x64xf32> to vector<2x32xf32>
    %99 = vector.extract_strided_slice %97 {offsets = [2, 32], sizes = [2, 32], strides = [1, 1]} : vector<4x64xf32> to vector<2x32xf32>
    %100 = tpu.concatenate %98, %99 in 0 : vector<2x32xf32>, vector<2x32xf32> -> vector<4x32xf32>
    %cst_69 = arith.constant dense<0.000000e+00> : vector<6x5xf32>
    %101 = tpu.matmul %28, %0, %cst_69 {dimension_numbers = #tpu.dot_dimension_numbers<[1], [0], [0], [1], [0, 0, 1, 1], [], []>} : vector<6x32xbf16>, vector<32x5xbf16>, vector<6x5xf32> -> vector<6x5xf32>
    %cst_70 = arith.constant 0.176776692 : f32
    %102 = vector.broadcast %cst_70 : f32 to vector<6x5xf32>
    %103 = arith.mulf %101, %102 : vector<6x5xf32>
    %104 = vector.extract_strided_slice %103 {offsets = [0, 0], sizes = [2, 5], strides = [1, 1]} : vector<6x5xf32> to vector<2x5xf32>
    %105 = vector.extract_strided_slice %103 {offsets = [2, 0], sizes = [2, 5], strides = [1, 1]} : vector<6x5xf32> to vector<2x5xf32>
    %106 = arith.maximumf %104, %105 : vector<2x5xf32>
    %107 = vector.extract_strided_slice %103 {offsets = [4, 0], sizes = [2, 5], strides = [1, 1]} : vector<6x5xf32> to vector<2x5xf32>
    %108 = arith.maximumf %106, %107 : vector<2x5xf32>
    %109 = tpu.concatenate %108, %108, %108 in 0 : vector<2x5xf32>, vector<2x5xf32>, vector<2x5xf32> -> vector<6x5xf32>
    %110 = arith.subf %103, %109 : vector<6x5xf32>
    %111 = math.exp %110 : vector<6x5xf32>
    %112 = vector.extract_strided_slice %111 {offsets = [0, 0], sizes = [2, 5], strides = [1, 1]} : vector<6x5xf32> to vector<2x5xf32>
    %113 = vector.extract_strided_slice %111 {offsets = [2, 0], sizes = [2, 5], strides = [1, 1]} : vector<6x5xf32> to vector<2x5xf32>
    %114 = arith.addf %112, %113 : vector<2x5xf32>
    %115 = vector.extract_strided_slice %111 {offsets = [4, 0], sizes = [2, 5], strides = [1, 1]} : vector<6x5xf32> to vector<2x5xf32>
    %116 = arith.addf %114, %115 : vector<2x5xf32>
    %cst_71 = arith.constant 1.000000e+00 : f32
    %117 = vector.broadcast %cst_71 : f32 to vector<2x5xf32>
    %118 = arith.divf %117, %116 : vector<2x5xf32>
    %119 = tpu.concatenate %118, %118, %118 in 0 : vector<2x5xf32>, vector<2x5xf32>, vector<2x5xf32> -> vector<6x5xf32>
    %120 = arith.mulf %111, %119 : vector<6x5xf32>
    %121 = arith.truncf %120 : vector<6x5xf32> to vector<6x5xbf16>
    %cst_72 = arith.constant dense<0.000000e+00> : vector<6x160xf32>
    %122 = tpu.matmul %121, %1, %cst_72 {dimension_numbers = #tpu.dot_dimension_numbers<[1], [0], [0], [1], [0, 0, 1, 1], [], []>} : vector<6x5xbf16>, vector<5x160xbf16>, vector<6x160xf32> -> vector<6x160xf32>
    %c0_73 = arith.constant 0 : index
    %c0_74 = arith.constant 0 : index
    %123 = vector.load %arg16[%c0_73, %c0_74] : memref<32x160xbf16, #tpu.memory_space<vmem>>, vector<32x160xbf16>
    %cst_75 = arith.constant dense<0.000000e+00> : vector<6x160xf32>
    %124 = tpu.matmul %28, %123, %cst_75 {dimension_numbers = #tpu.dot_dimension_numbers<[1], [0], [0], [1], [0, 0, 1, 1], [], []>} : vector<6x32xbf16>, vector<32x160xbf16>, vector<6x160xf32> -> vector<6x160xf32>
    %125 = arith.mulf %122, %124 : vector<6x160xf32>
    %126 = vector.extract_strided_slice %125 {offsets = [0, 0], sizes = [2, 160], strides = [1, 1]} : vector<6x160xf32> to vector<2x160xf32>
    %127 = vector.extract_strided_slice %125 {offsets = [2, 0], sizes = [2, 160], strides = [1, 1]} : vector<6x160xf32> to vector<2x160xf32>
    %128 = arith.addf %126, %127 : vector<2x160xf32>
    %129 = vector.extract_strided_slice %125 {offsets = [4, 0], sizes = [2, 160], strides = [1, 1]} : vector<6x160xf32> to vector<2x160xf32>
    %130 = arith.addf %128, %129 : vector<2x160xf32>
    %131 = arith.truncf %130 : vector<2x160xf32> to vector<2x160xbf16>
    %c0_76 = arith.constant 0 : index
    %c0_77 = arith.constant 0 : index
    %132 = vector.load %arg17[%c0_76, %c0_77] : memref<160x320xbf16, #tpu.memory_space<vmem>>, vector<160x320xbf16>
    %cst_78 = arith.constant dense<0.000000e+00> : vector<2x320xf32>
    %133 = tpu.matmul %131, %132, %cst_78 {dimension_numbers = #tpu.dot_dimension_numbers<[1], [0], [0], [1], [0, 0, 1, 1], [], []>} : vector<2x160xbf16>, vector<160x320xbf16>, vector<2x320xf32> -> vector<2x320xf32>
    %c0_79 = arith.constant 0 : index
    %c0_80 = arith.constant 0 : index
    %134 = vector.load %arg18[%c0_79, %c0_80] : memref<1x320xf32, #tpu.memory_space<vmem>>, vector<1x320xf32>
    %135 = vector.broadcast %134 : vector<1x320xf32> to vector<2x320xf32>
    %136 = arith.addf %133, %135 : vector<2x320xf32>
    %cst_81 = arith.constant 0.000000e+00 : f32
    %137 = vector.broadcast %cst_81 : f32 to vector<2x320xf32>
    %138 = arith.maximumf %136, %137 : vector<2x320xf32>
    %139 = arith.truncf %138 : vector<2x320xf32> to vector<2x320xbf16>
    %c0_82 = arith.constant 0 : index
    %c0_83 = arith.constant 0 : index
    %140 = vector.load %arg19[%c0_82, %c0_83] : memref<320x160xbf16, #tpu.memory_space<vmem>>, vector<320x160xbf16>
    %cst_84 = arith.constant dense<0.000000e+00> : vector<2x160xf32>
    %141 = tpu.matmul %139, %140, %cst_84 {dimension_numbers = #tpu.dot_dimension_numbers<[1], [0], [0], [1], [0, 0, 1, 1], [], []>} : vector<2x320xbf16>, vector<320x160xbf16>, vector<2x160xf32> -> vector<2x160xf32>
    %c0_85 = arith.constant 0 : index
    %c0_86 = arith.constant 0 : index
    %142 = vector.load %arg20[%c0_85, %c0_86] : memref<1x160xf32, #tpu.memory_space<vmem>>, vector<1x160xf32>
    %143 = vector.broadcast %142 : vector<1x160xf32> to vector<2x160xf32>
    %144 = arith.addf %141, %143 : vector<2x160xf32>
    %cst_87 = arith.constant 0.000000e+00 : f32
    %145 = vector.broadcast %cst_87 : f32 to vector<2x160xf32>
    %146 = arith.maximumf %144, %145 : vector<2x160xf32>
    %147 = arith.truncf %146 : vector<2x160xf32> to vector<2x160xbf16>
    %c0_88 = arith.constant 0 : index
    %c0_89 = arith.constant 0 : index
    %148 = vector.load %arg21[%c0_88, %c0_89] : memref<160x160xbf16, #tpu.memory_space<vmem>>, vector<160x160xbf16>
    %cst_90 = arith.constant dense<0.000000e+00> : vector<2x160xf32>
    %149 = tpu.matmul %147, %148, %cst_90 {dimension_numbers = #tpu.dot_dimension_numbers<[1], [0], [0], [1], [0, 0, 1, 1], [], []>} : vector<2x160xbf16>, vector<160x160xbf16>, vector<2x160xf32> -> vector<2x160xf32>
    %c0_91 = arith.constant 0 : index
    %c0_92 = arith.constant 0 : index
    %150 = vector.load %arg22[%c0_91, %c0_92] : memref<1x160xf32, #tpu.memory_space<vmem>>, vector<1x160xf32>
    %151 = vector.broadcast %150 : vector<1x160xf32> to vector<2x160xf32>
    %152 = arith.addf %149, %151 : vector<2x160xf32>
    %153 = arith.truncf %100 : vector<4x32xf32> to vector<4x32xbf16>
    %cst_93 = arith.constant dense<0.000000e+00> : vector<4x5xf32>
    %154 = tpu.matmul %153, %0, %cst_93 {dimension_numbers = #tpu.dot_dimension_numbers<[1], [0], [0], [1], [0, 0, 1, 1], [], []>} : vector<4x32xbf16>, vector<32x5xbf16>, vector<4x5xf32> -> vector<4x5xf32>
    %cst_94 = arith.constant 0.176776692 : f32
    %155 = vector.broadcast %cst_94 : f32 to vector<4x5xf32>
    %156 = arith.mulf %154, %155 : vector<4x5xf32>
    %c0_95 = arith.constant 0 : index
    %c0_96 = arith.constant 0 : index
    %157 = vector.load %arg15[%c0_95, %c0_96] : memref<4x5xf32, #tpu.memory_space<vmem>>, vector<4x5xf32>
    %158 = arith.addf %156, %157 : vector<4x5xf32>
    %cst_97 = arith.constant dense<0xFF800000> : vector<4xf32>
    %159 = vector.multi_reduction <maximumf>, %158, %cst_97 [1] : vector<4x5xf32> to vector<4xf32>
    %160 = vector.shape_cast %159 : vector<4xf32> to vector<4x1xf32>
    %161 = vector.broadcast %160 : vector<4x1xf32> to vector<4x5xf32>
    %162 = arith.subf %158, %161 : vector<4x5xf32>
    %163 = math.exp %162 : vector<4x5xf32>
    %cst_98 = arith.constant dense<0.000000e+00> : vector<4xf32>
    %164 = vector.multi_reduction <add>, %163, %cst_98 [1] : vector<4x5xf32> to vector<4xf32>
    %165 = vector.shape_cast %164 : vector<4xf32> to vector<4x1xf32>
    %166 = vector.broadcast %165 : vector<4x1xf32> to vector<4x5xf32>
    %167 = arith.divf %163, %166 : vector<4x5xf32>
    %168 = arith.truncf %167 : vector<4x5xf32> to vector<4x5xbf16>
    %cst_99 = arith.constant dense<0.000000e+00> : vector<4x160xf32>
    %169 = tpu.matmul %168, %1, %cst_99 {dimension_numbers = #tpu.dot_dimension_numbers<[1], [0], [0], [1], [0, 0, 1, 1], [], []>} : vector<4x5xbf16>, vector<5x160xbf16>, vector<4x160xf32> -> vector<4x160xf32>
    %170 = tpu.concatenate %152, %152 in 0 : vector<2x160xf32>, vector<2x160xf32> -> vector<4x160xf32>
    %171 = arith.mulf %169, %170 : vector<4x160xf32>
    %172 = arith.truncf %171 : vector<4x160xf32> to vector<4x160xbf16>
    %cst_100 = arith.constant dense<0.000000e+00> : vector<4x32xf32>
    %173 = tpu.matmul %172, %2, %cst_100 {dimension_numbers = #tpu.dot_dimension_numbers<[1], [0], [0], [1], [0, 0, 1, 1], [], []>} : vector<4x160xbf16>, vector<160x32xbf16>, vector<4x32xf32> -> vector<4x32xf32>
    %174 = arith.mulf %173, %91 : vector<4x32xf32>
    %cst_101 = arith.constant dense<0.000000e+00> : vector<4xf32>
    %175 = vector.multi_reduction <add>, %174, %cst_101 [1] : vector<4x32xf32> to vector<4xf32>
    %176 = vector.shape_cast %175 : vector<4xf32> to vector<4x1xf32>
    %cst_102 = arith.constant 0.000000e+00 : f32
    %177 = vector.broadcast %cst_102 : f32 to vector<4x122xf32>
    %178 = tpu.concatenate %176, %167, %177 in 1 : vector<4x1xf32>, vector<4x5xf32>, vector<4x122xf32> -> vector<4x128xf32>
    %c0_103 = arith.constant 0 : index
    %c0_104 = arith.constant 0 : index
    %179 = vector.load %arg25[%c0_103, %c0_104] : memref<4x128xf32, #tpu.memory_space<vmem>>, vector<4x128xf32>
    tpu.vector_store %arg25[%c0_103, %c0_104], %178 {strides = array<i32>} : memref<4x128xf32, #tpu.memory_space<vmem>>, vector<4x128xf32>,
    return
  }
}

</mosaic_0001>

<llo_original>
// kernel: mvke_forward.1
$region0: #{mvke_forward.1}
  #allocation0 [shape = 'u32[]', space=smem, size = 0x4, offset = 0x4, fixed_abs, tag = 'smem constant byte address 0x4 - core index']
  #allocation1 [shape = 'u32[144,128]{1,0:T(1,128)}', space=vmem, size = 0x12000, scoped, tag = 'internal scratch']
  %s0 = inlined_call_operand.vmem [shape: s32[2,3], index: 0, kind: input, shape index: {}]
  %s1 = inlined_call_operand.vmem [shape: s32[2,2], index: 1, kind: input, shape index: {}]
  %s2 = inlined_call_operand.vmem [shape: f32[150,32], index: 2, kind: input, shape index: {}]
  %s3 = inlined_call_operand.vmem [shape: f32[100,32], index: 3, kind: input, shape index: {}]
  %s4 = inlined_call_operand.vmem [shape: bf16[64,132], index: 4, kind: input, shape index: {}]
  %s5 = inlined_call_operand.vmem [shape: f32[1,132], index: 5, kind: input, shape index: {}]
  %s6 = inlined_call_operand.vmem [shape: bf16[128,64], index: 6, kind: input, shape index: {}]
  %s7 = inlined_call_operand.vmem [shape: f32[1,64], index: 7, kind: input, shape index: {}]
  %s8 = inlined_call_operand.vmem [shape: bf16[64,64], index: 8, kind: input, shape index: {}]
  %s9 = inlined_call_operand.vmem [shape: f32[1,64], index: 9, kind: input, shape index: {}]
  %s10 = inlined_call_operand.vmem [shape: bf16[2,64], index: 10, kind: input, shape index: {}]
  %s11 = inlined_call_operand.vmem [shape: bf16[64,32], index: 11, kind: input, shape index: {}]
  %s12 = inlined_call_operand.vmem [shape: bf16[32,64], index: 12, kind: input, shape index: {}]
  %s13 = inlined_call_operand.vmem [shape: f32[1,64], index: 13, kind: input, shape index: {}]
  %s14 = inlined_call_operand.vmem [shape: bf16[32,5], index: 14, kind: input, shape index: {}]
  %s15 = inlined_call_operand.vmem [shape: f32[4,5], index: 15, kind: input, shape index: {}]
  %s16 = inlined_call_operand.vmem [shape: bf16[32,160], index: 16, kind: input, shape index: {}]
  %s17 = inlined_call_operand.vmem [shape: bf16[160,320], index: 17, kind: input, shape index: {}]
  %s18 = inlined_call_operand.vmem [shape: f32[1,320], index: 18, kind: input, shape index: {}]
  %s19 = inlined_call_operand.vmem [shape: bf16[320,160], index: 19, kind: input, shape index: {}]
  %s20 = inlined_call_operand.vmem [shape: f32[1,160], index: 20, kind: input, shape index: {}]
  %s21 = inlined_call_operand.vmem [shape: bf16[160,160], index: 21, kind: input, shape index: {}]
  %s22 = inlined_call_operand.vmem [shape: f32[1,160], index: 22, kind: input, shape index: {}]
  %s23 = inlined_call_operand.vmem [shape: bf16[5,160], index: 23, kind: input, shape index: {}]
  %s24 = inlined_call_operand.vmem [shape: bf16[160,32], index: 24, kind: input, shape index: {}]
  %s25 = inlined_call_operand.vmem [shape: f32[4,128], index: 25, kind: output, shape index: {}]
  %s26 = sld [smem:[#allocation0]]
  $region118: #{mvke_forward.1} parent=0
    _
  %s28 = ssub.s32 1, %s26
  %s29 = scalar_select 0, %s28, %s26
  $region1: #{mvke_forward.1} parent=0
    #allocation2 [shape = 'u8[1024]{0}', space=smem, size = 0x400, scoped, tag = 'input window, operand 0, single buffered']
    #allocation3 [shape = 's32[1]{0}', space=sflag, size = 0x4, scoped, tag = 'scoped memory for mvke_forward.1']
    #allocation4 [shape = 'u8[1024]{0}', space=smem, size = 0x400, scoped, tag = 'input window, operand 1, single buffered']
    #allocation5 [shape = 's32[1]{0}', space=sflag, size = 0x4, scoped, tag = 'scoped memory for mvke_forward.1']
    %30 = vsyncpa [#allocation3], 0
    %31 = vsyncpa [#allocation5], 0
    // Predicated region
    $region2: #{mvke_forward.1} parent=1 // pred_check
      _
    $region3: #{mvke_forward.1} parent=1 // pred_check_branch
      %33 = sbr.rel (0) target = $region5
    $region4: #{mvke_forward.1} parent=1 // pred_region
      %s35 = ssub.s32 32, 32
      %36 = vsyncadd [#allocation3], %s35
      %s38 = sshll.u32 %s0, 4
      %s39 = int_to_ptr.vmem [resolvable:$true] %s38
      %41 = dma.vmem_to_smem %s39, 32, [#allocation2], [#allocation3]
    $region5: #{mvke_forward.1} parent=1 // pred_fallthru
      _
    // Predicated region
    $region6: #{mvke_forward.1} parent=1 // pred_check
      _
    $region7: #{mvke_forward.1} parent=1 // pred_check_branch
      %43 = sbr.rel (0) target = $region9
    $region8: #{mvke_forward.1} parent=1 // pred_region
      %s45 = ssub.s32 32, 32
      %46 = vsyncadd [#allocation5], %s45
      %s48 = sshll.u32 %s1, 4
      %s49 = int_to_ptr.vmem [resolvable:$true] %s48
      %51 = dma.vmem_to_smem %s49, 32, [#allocation4], [#allocation5]
    $region9: #{mvke_forward.1} parent=1 // pred_fallthru
      _
    // Predicated region
    $region10: #{mvke_forward.1} parent=1 // pred_check
      _
    $region11: #{mvke_forward.1} parent=1 // pred_check_branch
      %53 = sbr.rel (0) target = $region13
    $region12: #{mvke_forward.1} parent=1 // pred_region
      _
    $region13: #{mvke_forward.1} parent=1 // pred_fallthru
      _
    // Predicated region
    $region14: #{mvke_forward.1} parent=1 // pred_check
      _
    $region15: #{mvke_forward.1} parent=1 // pred_check_branch
      %55 = sbr.rel (0) target = $region17
    $region16: #{mvke_forward.1} parent=1 // pred_region
      _
    $region17: #{mvke_forward.1} parent=1 // pred_fallthru
      _
    // Predicated region
    $region18: #{mvke_forward.1} parent=1 // pred_check
      _
    $region19: #{mvke_forward.1} parent=1 // pred_check_branch
      %57 = sbr.rel (0) target = $region21
    $region20: #{mvke_forward.1} parent=1 // pred_region
      _
    $region21: #{mvke_forward.1} parent=1 // pred_fallthru
      _
    // Predicated region
    $region22: #{mvke_forward.1} parent=1 // pred_check
      _
    $region23: #{mvke_forward.1} parent=1 // pred_check_branch
      %59 = sbr.rel (0) target = $region25
    $region24: #{mvke_forward.1} parent=1 // pred_region
      _
    $region25: #{mvke_forward.1} parent=1 // pred_fallthru
      _
    // Predicated region
    $region26: #{mvke_forward.1} parent=1 // pred_check
      _
    $region27: #{mvke_forward.1} parent=1 // pred_check_branch
      %61 = sbr.rel (0) target = $region29
    $region28: #{mvke_forward.1} parent=1 // pred_region
      _
    $region29: #{mvke_forward.1} parent=1 // pred_fallthru
      _
    // Predicated region
    $region30: #{mvke_forward.1} parent=1 // pred_check
      _
    $region31: #{mvke_forward.1} parent=1 // pred_check_branch
      %63 = sbr.rel (0) target = $region33
    $region32: #{mvke_forward.1} parent=1 // pred_region
      _
    $region33: #{mvke_forward.1} parent=1 // pred_fallthru
      _
    // Predicated region
    $region34: #{mvke_forward.1} parent=1 // pred_check
      _
    $region35: #{mvke_forward.1} parent=1 // pred_check_branch
      %65 = sbr.rel (0) target = $region37
    $region36: #{mvke_forward.1} parent=1 // pred_region
      _
    $region37: #{mvke_forward.1} parent=1 // pred_fallthru
      _
    // Predicated region
    $region38: #{mvke_forward.1} parent=1 // pred_check
      _
    $region39: #{mvke_forward.1} parent=1 // pred_check_branch
      %67 = sbr.rel (0) target = $region41
    $region40: #{mvke_forward.1} parent=1 // pred_region
      _
    $region41: #{mvke_forward.1} parent=1 // pred_fallthru
      _
    // Predicated region
    $region42: #{mvke_forward.1} parent=1 // pred_check
      _
    $region43: #{mvke_forward.1} parent=1 // pred_check_branch
      %69 = sbr.rel (0) target = $region45
    $region44: #{mvke_forward.1} parent=1 // pred_region
      _
    $region45: #{mvke_forward.1} parent=1 // pred_fallthru
      _
    // Predicated region
    $region46: #{mvke_forward.1} parent=1 // pred_check
      _
    $region47: #{mvke_forward.1} parent=1 // pred_check_branch
      %71 = sbr.rel (0) target = $region49
    $region48: #{mvke_forward.1} parent=1 // pred_region
      _
    $region49: #{mvke_forward.1} parent=1 // pred_fallthru
      _
    // Predicated region
    $region50: #{mvke_forward.1} parent=1 // pred_check
      _
    $region51: #{mvke_forward.1} parent=1 // pred_check_branch
      %73 = sbr.rel (0) target = $region53
    $region52: #{mvke_forward.1} parent=1 // pred_region
      _
    $region53: #{mvke_forward.1} parent=1 // pred_fallthru
      _
    // Predicated region
    $region54: #{mvke_forward.1} parent=1 // pred_check
      _
    $region55: #{mvke_forward.1} parent=1 // pred_check_branch
      %75 = sbr.rel (0) target = $region57
    $region56: #{mvke_forward.1} parent=1 // pred_region
      _
    $region57: #{mvke_forward.1} parent=1 // pred_fallthru
      _
    // Predicated region
    $region58: #{mvke_forward.1} parent=1 // pred_check
      _
    $region59: #{mvke_forward.1} parent=1 // pred_check_branch
      %77 = sbr.rel (0) target = $region61
    $region60: #{mvke_forward.1} parent=1 // pred_region
      _
    $region61: #{mvke_forward.1} parent=1 // pred_fallthru
      _
    // Predicated region
    $region62: #{mvke_forward.1} parent=1 // pred_check
      _
    $region63: #{mvke_forward.1} parent=1 // pred_check_branch
      %79 = sbr.rel (0) target = $region65
    $region64: #{mvke_forward.1} parent=1 // pred_region
      _
    $region65: #{mvke_forward.1} parent=1 // pred_fallthru
      _
    // Predicated region
    $region66: #{mvke_forward.1} parent=1 // pred_check
      _
    $region67: #{mvke_forward.1} parent=1 // pred_check_branch
      %81 = sbr.rel (0) target = $region69
    $region68: #{mvke_forward.1} parent=1 // pred_region
      _
    $region69: #{mvke_forward.1} parent=1 // pred_fallthru
      _
    // Predicated region
    $region70: #{mvke_forward.1} parent=1 // pred_check
      _
    $region71: #{mvke_forward.1} parent=1 // pred_check_branch
      %83 = sbr.rel (0) target = $region73
    $region72: #{mvke_forward.1} parent=1 // pred_region
      _
    $region73: #{mvke_forward.1} parent=1 // pred_fallthru
      _
    // Predicated region
    $region74: #{mvke_forward.1} parent=1 // pred_check
      _
    $region75: #{mvke_forward.1} parent=1 // pred_check_branch
      %85 = sbr.rel (0) target = $region77
    $region76: #{mvke_forward.1} parent=1 // pred_region
      _
    $region77: #{mvke_forward.1} parent=1 // pred_fallthru
      _
    // Predicated region
    $region78: #{mvke_forward.1} parent=1 // pred_check
      _
    $region79: #{mvke_forward.1} parent=1 // pred_check_branch
      %87 = sbr.rel (0) target = $region81
    $region80: #{mvke_forward.1} parent=1 // pred_region
      _
    $region81: #{mvke_forward.1} parent=1 // pred_fallthru
      _
    // Predicated region
    $region82: #{mvke_forward.1} parent=1 // pred_check
      _
    $region83: #{mvke_forward.1} parent=1 // pred_check_branch
      %89 = sbr.rel (0) target = $region85
    $region84: #{mvke_forward.1} parent=1 // pred_region
      _
    $region85: #{mvke_forward.1} parent=1 // pred_fallthru
      _
    // Predicated region
    $region86: #{mvke_forward.1} parent=1 // pred_check
      _
    $region87: #{mvke_forward.1} parent=1 // pred_check_branch
      %91 = sbr.rel (0) target = $region89
    $region88: #{mvke_forward.1} parent=1 // pred_region
      _
    $region89: #{mvke_forward.1} parent=1 // pred_fallthru
      _
    // Predicated region
    $region90: #{mvke_forward.1} parent=1 // pred_check
      _
    $region91: #{mvke_forward.1} parent=1 // pred_check_branch
      %93 = sbr.rel (0) target = $region93
    $region92: #{mvke_forward.1} parent=1 // pred_region
      _
    $region93: #{mvke_forward.1} parent=1 // pred_fallthru
      _
    // Predicated region
    $region94: #{mvke_forward.1} parent=1 // pred_check
      _
    $region95: #{mvke_forward.1} parent=1 // pred_check_branch
      %95 = sbr.rel (0) target = $region97
    $region96: #{mvke_forward.1} parent=1 // pred_region
      _
    $region97: #{mvke_forward.1} parent=1 // pred_fallthru
      _
    // Predicated region
    $region98: #{mvke_forward.1} parent=1 // pred_check
      _
    $region99: #{mvke_forward.1} parent=1 // pred_check_branch
      %97 = sbr.rel (0) target = $region101
    $region100: #{mvke_forward.1} parent=1 // pred_region
      _
    $region101: #{mvke_forward.1} parent=1 // pred_fallthru
      _
    // Predicated region
    $region102: #{mvke_forward.1} parent=1 // pred_check
      _
    $region103: #{mvke_forward.1} parent=1 // pred_check_branch
      %99 = sbr.rel (0) target = $region105
    $region104: #{mvke_forward.1} parent=1 // pred_region
      %100 = dma.done [#allocation3], 32
    $region105: #{mvke_forward.1} parent=1 // pred_fallthru
      _
    // Predicated region
    $region106: #{mvke_forward.1} parent=1 // pred_check
      _
    $region107: #{mvke_forward.1} parent=1 // pred_check_branch
      %102 = sbr.rel (0) target = $region109
    $region108: #{mvke_forward.1} parent=1 // pred_region
      %103 = dma.done [#allocation5], 32
    $region109: #{mvke_forward.1} parent=1 // pred_fallthru
      _
    %104 = sfence
    %v106 = vld [vmem:[%s14] sm:$0xf]
    %v107 = vld [vmem:[%s14 + $0x4] sm:$0xf]
    %v108 = vld [vmem:[%s14 + $0x8] sm:$0xf]
    %v109 = vld [vmem:[%s14 + $0xc] sm:$0xf]
    %v110 = vld [vmem:[%s23] sm:$0x77]
    %v111 = vld [vmem:[%s24] sm:$0xf]
    %v112 = vld [vmem:[%s24 + $0x4] sm:$0xf]
    %v113 = vld [vmem:[%s24 + $0x8] sm:$0xf]
    %v114 = vld [vmem:[%s24 + $0xc] sm:$0xf]
    %v115 = vld [vmem:[%s24 + $0x10] sm:$0xf]
    %v116 = vld [vmem:[%s24 + $0x14] sm:$0xf]
    %v117 = vld [vmem:[%s24 + $0x18] sm:$0xf]
    %v118 = vld [vmem:[%s24 + $0x1c] sm:$0xf]
    %v119 = vld [vmem:[%s24 + $0x20] sm:$0xf]
    %v120 = vld [vmem:[%s24 + $0x24] sm:$0xf]
    %v121 = vld [vmem:[%s24 + $0x28] sm:$0xf]
    %v122 = vld [vmem:[%s24 + $0x2c] sm:$0xf]
    %v123 = vld [vmem:[%s24 + $0x30] sm:$0xf]
    %v124 = vld [vmem:[%s24 + $0x34] sm:$0xf]
    %v125 = vld [vmem:[%s24 + $0x38] sm:$0xf]
    %v126 = vld [vmem:[%s24 + $0x3c] sm:$0xf]
    %v127 = vld [vmem:[%s24 + $0x40] sm:$0xf]
    %v128 = vld [vmem:[%s24 + $0x44] sm:$0xf]
    %v129 = vld [vmem:[%s24 + $0x48] sm:$0xf]
    %v130 = vld [vmem:[%s24 + $0x4c] sm:$0xf]
    %s131 = sld [smem:[#allocation2]]
    %s132 = scalar_lea.vmem %s2, %s131
    %v133 = vld [vmem:[%s132] sm:$0x1]
    %s134 = sld [smem:[#allocation2 + $0x80]]
    %s135 = scalar_lea.vmem %s2, %s134
    %v136 = vld [vmem:[%s135] sm:$0x1]
    %s137 = sld [smem:[#allocation2 + $0x1]]
    %s138 = sadd.s32 %s137, 50
    %s139 = scalar_lea.vmem %s2, %s138
    %v140 = vld [vmem:[%s139] sm:$0x1]
    %s141 = sld [smem:[#allocation2 + $0x81]]
    %s142 = sadd.s32 %s141, 50
    %s143 = scalar_lea.vmem %s2, %s142
    %v144 = vld [vmem:[%s143] sm:$0x1]
    %s145 = sld [smem:[#allocation2 + $0x2]]
    %s146 = sadd.s32 %s145, 100
    %s147 = scalar_lea.vmem %s2, %s146
    %v148 = vld [vmem:[%s147] sm:$0x1]
    %s149 = sld [smem:[#allocation2 + $0x82]]
    %s150 = sadd.s32 %s149, 100
    %s151 = scalar_lea.vmem %s2, %s150
    %v152 = vld [vmem:[%s151] sm:$0x1]
    %v154 = vrot.slane %v136, 7
    %v157 = vrot.slane %v140, 6
    %v160 = vrot.slane %v144, 5
    %v163 = vrot.slane %v148, 4
    %v166 = vrot.slane %v152, 3
    %vm168 = vcmask 1040384
    %v169 = vsel %vm168, %v133, %v154
    %vm170 = vcmask 1041408
    %v171 = vsel %vm170, %v169, %v157
    %vm172 = vcmask 1042432
    %v173 = vsel %vm172, %v171, %v160
    %vm174 = vcmask 1043456
    %v175 = vsel %vm174, %v173, %v163
    %vm176 = vcmask 1044480
    %v177 = vsel %vm176, %v175, %v166
    %v178 = vpack.c.bf16 %v177, %v177
    %s179 = sld [smem:[#allocation4]]
    %s180 = scalar_lea.vmem %s3, %s179
    %v181 = vld [vmem:[%s180] sm:$0x1]
    %s182 = sld [smem:[#allocation4 + $0x1]]
    %s183 = sadd.s32 %s182, 50
    %s184 = scalar_lea.vmem %s3, %s183
    %v185 = vld [vmem:[%s184] sm:$0x1]
    %187 = vrot.lane.b32.xlu0 %v185, 32
    %v188 = vpop.permute.xlu0 %187
    %vm190 = vcmask 261120
    %v191 = vsel %vm190, %v181, %v188
    %s192 = sld [smem:[#allocation4 + $0x80]]
    %s193 = scalar_lea.vmem %s3, %s192
    %v194 = vld [vmem:[%s193] sm:$0x1]
    %s195 = sld [smem:[#allocation4 + $0x81]]
    %s196 = sadd.s32 %s195, 50
    %s197 = scalar_lea.vmem %s3, %s196
    %v198 = vld [vmem:[%s197] sm:$0x1]
    %200 = vrot.lane.b32.xlu0 %v198, 32
    %v201 = vpop.permute.xlu0 %200
    %v203 = vsel %vm190, %v194, %v201
    %v205 = vrot.slane %v203, 7
    %v207 = vsel %vm168, %v191, %v205
    %v208 = vpack.c.bf16 %v207, %v207
    %v209 = vld [vmem:[%s4] sm:$0xff]
    %v210 = vld [vmem:[%s4 + $0x8] sm:$0xff]
    %v211 = vld [vmem:[%s4 + $0x10] sm:$0xff]
    %v212 = vld [vmem:[%s4 + $0x18] sm:$0xff]
    %v213 = vld [vmem:[%s4 + $0x20] sm:$0xff]
    %v214 = vld [vmem:[%s4 + $0x28] sm:$0xff]
    %v215 = vld [vmem:[%s4 + $0x30] sm:$0xff]
    %v216 = vld [vmem:[%s4 + $0x38] sm:$0xff]
    %v217 = vld [vmem:[%s5] sm:$0x3]
    %v219 = vlaneseq
    %v220 = vshrl.u32 %v219, 7
    %v221 = vsub.s32 0, %v220
    %v222 = vrot.slane %v217, %v221
    %v223 = vlaneseq
    %v224 = vshrl.u32 %v223, 7
    %v225 = vsub.s32 1, %v224
    %v226 = vrot.slane %v217, %v225
    %v237 = vunpack.c.l.b16 %v209
    %v238 = vunpack.c.h.b16 %v209
    %v239 = vunpack.c.l.b16 %v210
    %v240 = vunpack.c.h.b16 %v210
    %v241 = vunpack.c.l.b16 %v211
    %v242 = vunpack.c.h.b16 %v211
    %v243 = vunpack.c.l.b16 %v212
    %v244 = vunpack.c.h.b16 %v212
    %v245 = vunpack.c.l.b16 %v213
    %v246 = vunpack.c.h.b16 %v213
    %v247 = vunpack.c.l.b16 %v214
    %v248 = vunpack.c.h.b16 %v214
    %v249 = vunpack.c.l.b16 %v215
    %v250 = vunpack.c.h.b16 %v215
    %v251 = vunpack.c.l.b16 %v216
    %v252 = vunpack.c.h.b16 %v216
    %v253 = vpack.c.b16 %v239, %v237
    %v254 = vpack.c.b16 %v240, %v238
    %v255 = vpack.c.b16 %v243, %v241
    %v256 = vpack.c.b16 %v244, %v242
    %v257 = vpack.c.b16 %v247, %v245
    %v258 = vpack.c.b16 %v248, %v246
    %v259 = vpack.c.b16 %v251, %v249
    %v260 = vpack.c.b16 %v252, %v250
    %vm269 = vcmask 523264
    %v271 = vsel %vm269, %v208, 0
    %273 = vmatprep.subr.bf16.mxu0 0
    %274 = vmatpush1.bf16.msra.mxu0 0
    %275 = vmatprep.subr.bf16.mxu0 0
    %276 = vmatpush1.bf16.msra.mxu0 0
    %277 = vmatprep.subr.bf16.mxu0 0
    %278 = vmatpush1.bf16.msra.mxu0 0
    %279 = vmatprep.subr.bf16.mxu0 0
    %280 = vmatpush1.bf16.msra.mxu0 0
    %281 = vmatprep.subr.bf16.mxu0 %v260
    %282 = vmatpush1.bf16.msra.mxu0 %v259
    %283 = vmatprep.subr.bf16.mxu0 %v258
    %284 = vmatpush1.bf16.msra.mxu0 %v257
    %285 = vmatprep.subr.bf16.mxu0 %v256
    %286 = vmatpush1.bf16.msra.mxu0 %v255
    %287 = vmatprep.subr.bf16.mxu0 %v254
    %288 = vmatpush1.bf16.msra.mxu0 %v253
    %289 = vmatprep.subr.bf16.mxu0 0
    %290 = vmatpush2.bf16.msra.mxu0 0
    %291 = vmatprep.subr.bf16.mxu0 0
    %292 = vmatpush2.bf16.msra.mxu0 0
    %293 = vmatprep.subr.bf16.mxu0 0
    %294 = vmatpush2.bf16.msra.mxu0 0
    %295 = vmatprep.subr.bf16.mxu0 0
    %296 = vmatpush2.bf16.msra.mxu0 0
    %297 = vmatprep.subr.bf16.mxu0 0
    %298 = vmatpush2.bf16.msra.mxu0 0
    %299 = vmatprep.subr.bf16.mxu0 0
    %300 = vmatpush2.bf16.msra.mxu0 0
    %301 = vmatprep.subr.bf16.mxu0 0
    %302 = vmatpush2.bf16.msra.mxu0 0
    %303 = vmatprep.subr.bf16.mxu0 0
    %304 = vmatpush2.bf16.msra.mxu0 0
    %305 = vmatprep.mubr.bf16.mxu0 0
    %306 = vmatmul.mubr.bf16.gmra.mxu0 %v271
    %v307 = vpop.f32.mrf.mxu0
    %v308 = vadd.f32 %v222, %v307
    %v309 = vpop.f32.mrf.mxu0
    %v310 = vadd.f32 %v226, %v309
    %v311 = vpop.f32.mrf.mxu0
    %v312 = vpop.f32.mrf.mxu0
    %313 = vdwg.mxu0
    %v314 = vmax.f32 %v308, 0.0
    %v315 = vpack.c.bf16 %v314, %v314
    %v316 = vld [vmem:[%s6] sm:$0xf]
    %v317 = vld [vmem:[%s6 + $0x4] sm:$0xf]
    %v318 = vld [vmem:[%s6 + $0x8] sm:$0xf]
    %v319 = vld [vmem:[%s6 + $0xc] sm:$0xf]
    %v320 = vld [vmem:[%s6 + $0x10] sm:$0xf]
    %v321 = vld [vmem:[%s6 + $0x14] sm:$0xf]
    %v322 = vld [vmem:[%s6 + $0x18] sm:$0xf]
    %v323 = vld [vmem:[%s6 + $0x1c] sm:$0xf]
    %v324 = vld [vmem:[%s6 + $0x20] sm:$0xf]
    %v325 = vld [vmem:[%s6 + $0x24] sm:$0xf]
    %v326 = vld [vmem:[%s6 + $0x28] sm:$0xf]
    %v327 = vld [vmem:[%s6 + $0x2c] sm:$0xf]
    %v328 = vld [vmem:[%s6 + $0x30] sm:$0xf]
    %v329 = vld [vmem:[%s6 + $0x34] sm:$0xf]
    %v330 = vld [vmem:[%s6 + $0x38] sm:$0xf]
    %v331 = vld [vmem:[%s6 + $0x3c] sm:$0xf]
    %v332 = vld [vmem:[%s7] sm:$0x1]
    %v334 = vlaneseq
    %v335 = vshrl.u32 %v334, 7
    %v336 = vsub.s32 0, %v335
    %v337 = vrot.slane %v332, %v336
    %v355 = vunpack.c.l.b16 %v316
    %v356 = vunpack.c.l.b16 %v317
    %v357 = vunpack.c.l.b16 %v318
    %v358 = vunpack.c.l.b16 %v319
    %v359 = vunpack.c.l.b16 %v320
    %v360 = vunpack.c.l.b16 %v321
    %v361 = vunpack.c.l.b16 %v322
    %v362 = vunpack.c.l.b16 %v323
    %v363 = vunpack.c.l.b16 %v324
    %v364 = vunpack.c.l.b16 %v325
    %v365 = vunpack.c.l.b16 %v326
    %v366 = vunpack.c.l.b16 %v327
    %v367 = vunpack.c.l.b16 %v328
    %v368 = vunpack.c.l.b16 %v329
    %v369 = vunpack.c.l.b16 %v330
    %v370 = vunpack.c.l.b16 %v331
    %v371 = vpack.c.b16 %v356, %v355
    %v372 = vpack.c.b16 %v358, %v357
    %v373 = vpack.c.b16 %v360, %v359
    %v374 = vpack.c.b16 %v362, %v361
    %v375 = vpack.c.b16 %v364, %v363
    %v376 = vpack.c.b16 %v366, %v365
    %v377 = vpack.c.b16 %v368, %v367
    %v378 = vpack.c.b16 %v370, %v369
    %387 = vmatprep.subr.bf16.mxu0 0
    %388 = vmatpush1.bf16.msra.mxu0 %v378
    %389 = vmatprep.subr.bf16.mxu0 0
    %390 = vmatpush1.bf16.msra.mxu0 %v377
    %391 = vmatprep.subr.bf16.mxu0 0
    %392 = vmatpush1.bf16.msra.mxu0 %v376
    %393 = vmatprep.subr.bf16.mxu0 0
    %394 = vmatpush1.bf16.msra.mxu0 %v375
    %395 = vmatprep.subr.bf16.mxu0 0
    %396 = vmatpush1.bf16.msra.mxu0 %v374
    %397 = vmatprep.subr.bf16.mxu0 0
    %398 = vmatpush1.bf16.msra.mxu0 %v373
    %399 = vmatprep.subr.bf16.mxu0 0
    %400 = vmatpush1.bf16.msra.mxu0 %v372
    %401 = vmatprep.subr.bf16.mxu0 0
    %402 = vmatpush1.bf16.msra.mxu0 %v371
    %403 = vmatprep.subr.bf16.mxu0 0
    %404 = vmatpush2.bf16.msra.mxu0 0
    %405 = vmatprep.subr.bf16.mxu0 0
    %406 = vmatpush2.bf16.msra.mxu0 0
    %407 = vmatprep.subr.bf16.mxu0 0
    %408 = vmatpush2.bf16.msra.mxu0 0
    %409 = vmatprep.subr.bf16.mxu0 0
    %410 = vmatpush2.bf16.msra.mxu0 0
    %411 = vmatprep.subr.bf16.mxu0 0
    %412 = vmatpush2.bf16.msra.mxu0 0
    %413 = vmatprep.subr.bf16.mxu0 0
    %414 = vmatpush2.bf16.msra.mxu0 0
    %415 = vmatprep.subr.bf16.mxu0 0
    %416 = vmatpush2.bf16.msra.mxu0 0
    %417 = vmatprep.subr.bf16.mxu0 0
    %418 = vmatpush2.bf16.msra.mxu0 0
    %419 = vmatprep.mubr.bf16.mxu0 0
    %420 = vmatmul.mubr.bf16.gmra.mxu0 %v315
    %v421 = vpop.f32.mrf.mxu0
    %v422 = vadd.f32 %v337, %v421
    %v423 = vpop.f32.mrf.mxu0
    %v424 = vpop.f32.mrf.mxu0
    %v425 = vpop.f32.mrf.mxu0
    %426 = vdwg.mxu0
    %v427 = vmax.f32 %v422, 0.0
    %v428 = vpack.c.bf16 %v427, %v427
    %v429 = vld [vmem:[%s8] sm:$0xf]
    %v430 = vld [vmem:[%s8 + $0x4] sm:$0xf]
    %v431 = vld [vmem:[%s8 + $0x8] sm:$0xf]
    %v432 = vld [vmem:[%s8 + $0xc] sm:$0xf]
    %v433 = vld [vmem:[%s8 + $0x10] sm:$0xf]
    %v434 = vld [vmem:[%s8 + $0x14] sm:$0xf]
    %v435 = vld [vmem:[%s8 + $0x18] sm:$0xf]
    %v436 = vld [vmem:[%s8 + $0x1c] sm:$0xf]
    %v437 = vld [vmem:[%s9] sm:$0x1]
    %v439 = vlaneseq
    %v440 = vshrl.u32 %v439, 7
    %v441 = vsub.s32 0, %v440
    %v442 = vrot.slane %v437, %v441
    %v452 = vunpack.c.l.b16 %v429
    %v453 = vunpack.c.l.b16 %v430
    %v454 = vunpack.c.l.b16 %v431
    %v455 = vunpack.c.l.b16 %v432
    %v456 = vunpack.c.l.b16 %v433
    %v457 = vunpack.c.l.b16 %v434
    %v458 = vunpack.c.l.b16 %v435
    %v459 = vunpack.c.l.b16 %v436
    %v460 = vpack.c.b16 %v453, %v452
    %v461 = vpack.c.b16 %v455, %v454
    %v462 = vpack.c.b16 %v457, %v456
    %v463 = vpack.c.b16 %v459, %v458
    %v469 = vsel %vm269, %v428, 0
    %471 = vmatprep.subr.bf16.mxu0 0
    %472 = vmatpush1.bf16.msra.mxu0 0
    %473 = vmatprep.subr.bf16.mxu0 0
    %474 = vmatpush1.bf16.msra.mxu0 0
    %475 = vmatprep.subr.bf16.mxu0 0
    %476 = vmatpush1.bf16.msra.mxu0 0
    %477 = vmatprep.subr.bf16.mxu0 0
    %478 = vmatpush1.bf16.msra.mxu0 0
    %479 = vmatprep.subr.bf16.mxu0 0
    %480 = vmatpush1.bf16.msra.mxu0 %v463
    %481 = vmatprep.subr.bf16.mxu0 0
    %482 = vmatpush1.bf16.msra.mxu0 %v462
    %483 = vmatprep.subr.bf16.mxu0 0
    %484 = vmatpush1.bf16.msra.mxu0 %v461
    %485 = vmatprep.subr.bf16.mxu0 0
    %486 = vmatpush1.bf16.msra.mxu0 %v460
    %487 = vmatprep.subr.bf16.mxu0 0
    %488 = vmatpush2.bf16.msra.mxu0 0
    %489 = vmatprep.subr.bf16.mxu0 0
    %490 = vmatpush2.bf16.msra.mxu0 0
    %491 = vmatprep.subr.bf16.mxu0 0
    %492 = vmatpush2.bf16.msra.mxu0 0
    %493 = vmatprep.subr.bf16.mxu0 0
    %494 = vmatpush2.bf16.msra.mxu0 0
    %495 = vmatprep.subr.bf16.mxu0 0
    %496 = vmatpush2.bf16.msra.mxu0 0
    %497 = vmatprep.subr.bf16.mxu0 0
    %498 = vmatpush2.bf16.msra.mxu0 0
    %499 = vmatprep.subr.bf16.mxu0 0
    %500 = vmatpush2.bf16.msra.mxu0 0
    %501 = vmatprep.subr.bf16.mxu0 0
    %502 = vmatpush2.bf16.msra.mxu0 0
    %503 = vmatprep.mubr.bf16.mxu0 0
    %504 = vmatmul.mubr.bf16.gmra.mxu0 %v469
    %v505 = vpop.f32.mrf.mxu0
    %v506 = vadd.f32 %v442, %v505
    %v507 = vpop.f32.mrf.mxu0
    %v508 = vpop.f32.mrf.mxu0
    %v509 = vpop.f32.mrf.mxu0
    %510 = vdwg.mxu0
    %v512 = vrot.slane %v310, 6
    %513 = vrot.lane.b32.xlu0 %v512, 126
    %v514 = vpop.permute.xlu0 %513
    %v516 = vsel %vm170, %v310, %v514
    %vm517 = vcmask 11264
    %v518 = vsel %vm517, %v516, -inf
    %519 = vmax.xlane.f32.xlu0 %v518
    %v520 = vpop.xlane.xlu0 %519
    %v521 = vsub.f32 %v516, %v520
    %v522 = vmul.f32 %v521, 1.442695
    %v523 = vpow.pop %v522
    %v524 = vsel %vm517, %v523, 0.0
    %525 = vadd.xlane.f32.xlu0 %v524
    %v526 = vpop.xlane.xlu0 %525
    %v527 = vrcp.pop %v526
    %v528 = vmul.f32 %v523, %v527
    %v529 = vpack.c.bf16 %v528, %v528
    %v530 = vld [vmem:[%s10] sm:$0x1]
    %vm531 = vcmask 15360
    %v533 = vsel %vm531, %v529, 0
    %v536 = vsel %vm168, %v530, 0
    %538 = vmatprep.subr.bf16.mxu0 0
    %539 = vmatpush1.bf16.msra.mxu0 0
    %540 = vmatprep.subr.bf16.mxu0 0
    %541 = vmatpush1.bf16.msra.mxu0 0
    %542 = vmatprep.subr.bf16.mxu0 0
    %543 = vmatpush1.bf16.msra.mxu0 0
    %544 = vmatprep.subr.bf16.mxu0 0
    %545 = vmatpush1.bf16.msra.mxu0 0
    %546 = vmatprep.subr.bf16.mxu0 0
    %547 = vmatpush1.bf16.msra.mxu0 0
    %548 = vmatprep.subr.bf16.mxu0 0
    %549 = vmatpush1.bf16.msra.mxu0 0
    %550 = vmatprep.subr.bf16.mxu0 0
    %551 = vmatpush1.bf16.msra.mxu0 0
    %552 = vmatprep.subr.bf16.mxu0 0
    %553 = vmatpush1.bf16.msra.mxu0 %v536
    %554 = vmatprep.subr.bf16.mxu0 0
    %555 = vmatpush2.bf16.msra.mxu0 0
    %556 = vmatprep.subr.bf16.mxu0 0
    %557 = vmatpush2.bf16.msra.mxu0 0
    %558 = vmatprep.subr.bf16.mxu0 0
    %559 = vmatpush2.bf16.msra.mxu0 0
    %560 = vmatprep.subr.bf16.mxu0 0
    %561 = vmatpush2.bf16.msra.mxu0 0
    %562 = vmatprep.subr.bf16.mxu0 0
    %563 = vmatpush2.bf16.msra.mxu0 0
    %564 = vmatprep.subr.bf16.mxu0 0
    %565 = vmatpush2.bf16.msra.mxu0 0
    %566 = vmatprep.subr.bf16.mxu0 0
    %567 = vmatpush2.bf16.msra.mxu0 0
    %568 = vmatprep.subr.bf16.mxu0 0
    %569 = vmatpush2.bf16.msra.mxu0 0
    %570 = vmatprep.mubr.bf16.mxu0 0
    %571 = vmatmul.mubr.bf16.gmra.mxu0 %v533
    %v572 = vpop.f32.mrf.mxu0
    %v573 = vadd.f32 0.0, %v572
    %v574 = vpop.f32.mrf.mxu0
    %v575 = vpop.f32.mrf.mxu0
    %v576 = vpop.f32.mrf.mxu0
    %577 = vdwg.mxu0
    %v579 = vrot.slane %v506, 6
    %v581 = vsel %vm170, %v506, %v579
    %v582 = vmul.f32 %v573, %v581
    %v583 = vpack.c.bf16 %v582, %v582
    %v584 = vld [vmem:[%s11] sm:$0xf]
    %v585 = vld [vmem:[%s11 + $0x4] sm:$0xf]
    %v586 = vld [vmem:[%s11 + $0x8] sm:$0xf]
    %v587 = vld [vmem:[%s11 + $0xc] sm:$0xf]
    %v588 = vld [vmem:[%s11 + $0x10] sm:$0xf]
    %v589 = vld [vmem:[%s11 + $0x14] sm:$0xf]
    %v590 = vld [vmem:[%s11 + $0x18] sm:$0xf]
    %v591 = vld [vmem:[%s11 + $0x1c] sm:$0xf]
    %v600 = vunpack.c.l.b16 %v584
    %v601 = vunpack.c.l.b16 %v585
    %v602 = vunpack.c.l.b16 %v586
    %v603 = vunpack.c.l.b16 %v587
    %v604 = vunpack.c.l.b16 %v588
    %v605 = vunpack.c.l.b16 %v589
    %v606 = vunpack.c.l.b16 %v590
    %v607 = vunpack.c.l.b16 %v591
    %v608 = vpack.c.b16 %v601, %v600
    %v609 = vpack.c.b16 %v603, %v602
    %v610 = vpack.c.b16 %v605, %v604
    %v611 = vpack.c.b16 %v607, %v606
    %v617 = vsel %vm269, %v583, 0
    %619 = vmatprep.subr.bf16.mxu0 0
    %620 = vmatpush1.bf16.msra.mxu0 0
    %621 = vmatprep.subr.bf16.mxu0 0
    %622 = vmatpush1.bf16.msra.mxu0 0
    %623 = vmatprep.subr.bf16.mxu0 0
    %624 = vmatpush1.bf16.msra.mxu0 0
    %625 = vmatprep.subr.bf16.mxu0 0
    %626 = vmatpush1.bf16.msra.mxu0 0
    %627 = vmatprep.subr.bf16.mxu0 0
    %628 = vmatpush1.bf16.msra.mxu0 %v611
    %629 = vmatprep.subr.bf16.mxu0 0
    %630 = vmatpush1.bf16.msra.mxu0 %v610
    %631 = vmatprep.subr.bf16.mxu0 0
    %632 = vmatpush1.bf16.msra.mxu0 %v609
    %633 = vmatprep.subr.bf16.mxu0 0
    %634 = vmatpush1.bf16.msra.mxu0 %v608
    %635 = vmatprep.subr.bf16.mxu0 0
    %636 = vmatpush2.bf16.msra.mxu0 0
    %637 = vmatprep.subr.bf16.mxu0 0
    %638 = vmatpush2.bf16.msra.mxu0 0
    %639 = vmatprep.subr.bf16.mxu0 0
    %640 = vmatpush2.bf16.msra.mxu0 0
    %641 = vmatprep.subr.bf16.mxu0 0
    %642 = vmatpush2.bf16.msra.mxu0 0
    %643 = vmatprep.subr.bf16.mxu0 0
    %644 = vmatpush2.bf16.msra.mxu0 0
    %645 = vmatprep.subr.bf16.mxu0 0
    %646 = vmatpush2.bf16.msra.mxu0 0
    %647 = vmatprep.subr.bf16.mxu0 0
    %648 = vmatpush2.bf16.msra.mxu0 0
    %649 = vmatprep.subr.bf16.mxu0 0
    %650 = vmatpush2.bf16.msra.mxu0 0
    %651 = vmatprep.mubr.bf16.mxu0 0
    %652 = vmatmul.mubr.bf16.gmra.mxu0 %v617
    %v653 = vpop.f32.mrf.mxu0
    %v654 = vadd.f32 0.0, %v653
    %v655 = vpop.f32.mrf.mxu0
    %v656 = vpop.f32.mrf.mxu0
    %v657 = vpop.f32.mrf.mxu0
    %658 = vdwg.mxu0
    %v659 = vpack.c.bf16 %v654, %v654
    %v660 = vld [vmem:[%s12] sm:$0xf]
    %v661 = vld [vmem:[%s12 + $0x4] sm:$0xf]
    %v662 = vld [vmem:[%s12 + $0x8] sm:$0xf]
    %v663 = vld [vmem:[%s12 + $0xc] sm:$0xf]
    %v664 = vld [vmem:[%s13] sm:$0x1]
    %v666 = vlaneseq
    %v667 = vshrl.u32 %v666, 7
    %v668 = vsub.s32 0, %v667
    %v669 = vrot.slane %v664, %v668
    %v675 = vunpack.c.l.b16 %v660
    %v676 = vunpack.c.l.b16 %v661
    %v677 = vunpack.c.l.b16 %v662
    %v678 = vunpack.c.l.b16 %v663
    %v679 = vpack.c.b16 %v676, %v675
    %v680 = vpack.c.b16 %v678, %v677
    %v684 = vsel %vm190, %v659, 0
    %686 = vmatprep.subr.bf16.mxu0 0
    %687 = vmatpush1.bf16.msra.mxu0 0
    %688 = vmatprep.subr.bf16.mxu0 0
    %689 = vmatpush1.bf16.msra.mxu0 0
    %690 = vmatprep.subr.bf16.mxu0 0
    %691 = vmatpush1.bf16.msra.mxu0 0
    %692 = vmatprep.subr.bf16.mxu0 0
    %693 = vmatpush1.bf16.msra.mxu0 0
    %694 = vmatprep.subr.bf16.mxu0 0
    %695 = vmatpush1.bf16.msra.mxu0 0
    %696 = vmatprep.subr.bf16.mxu0 0
    %697 = vmatpush1.bf16.msra.mxu0 0
    %698 = vmatprep.subr.bf16.mxu0 0
    %699 = vmatpush1.bf16.msra.mxu0 %v680
    %700 = vmatprep.subr.bf16.mxu0 0
    %701 = vmatpush1.bf16.msra.mxu0 %v679
    %702 = vmatprep.subr.bf16.mxu0 0
    %703 = vmatpush2.bf16.msra.mxu0 0
    %704 = vmatprep.subr.bf16.mxu0 0
    %705 = vmatpush2.bf16.msra.mxu0 0
    %706 = vmatprep.subr.bf16.mxu0 0
    %707 = vmatpush2.bf16.msra.mxu0 0
    %708 = vmatprep.subr.bf16.mxu0 0
    %709 = vmatpush2.bf16.msra.mxu0 0
    %710 = vmatprep.subr.bf16.mxu0 0
    %711 = vmatpush2.bf16.msra.mxu0 0
    %712 = vmatprep.subr.bf16.mxu0 0
    %713 = vmatpush2.bf16.msra.mxu0 0
    %714 = vmatprep.subr.bf16.mxu0 0
    %715 = vmatpush2.bf16.msra.mxu0 0
    %716 = vmatprep.subr.bf16.mxu0 0
    %717 = vmatpush2.bf16.msra.mxu0 0
    %718 = vmatprep.mubr.bf16.mxu0 0
    %719 = vmatmul.mubr.bf16.gmra.mxu0 %v684
    %v720 = vpop.f32.mrf.mxu0
    %v721 = vadd.f32 %v669, %v720
    %v722 = vpop.f32.mrf.mxu0
    %v723 = vpop.f32.mrf.mxu0
    %v724 = vpop.f32.mrf.mxu0
    %725 = vdwg.mxu0
    %727 = vrot.lane.b32.xlu0 %v721, 96
    %v728 = vpop.permute.xlu0 %727
    %v730 = vsel %vm170, %v721, %v728
    %v735 = vunpack.c.l.b16 %v106
    %v736 = vunpack.c.l.b16 %v107
    %v737 = vunpack.c.l.b16 %v108
    %v738 = vunpack.c.l.b16 %v109
    %v739 = vpack.c.b16 %v736, %v735
    %v740 = vpack.c.b16 %v738, %v737
    %v744 = vsel %vm190, %v178, 0
    %746 = vmatprep.subr.bf16.mxu0 0
    %747 = vmatpush1.bf16.msra.mxu0 0
    %748 = vmatprep.subr.bf16.mxu0 0
    %749 = vmatpush1.bf16.msra.mxu0 0
    %750 = vmatprep.subr.bf16.mxu0 0
    %751 = vmatpush1.bf16.msra.mxu0 0
    %752 = vmatprep.subr.bf16.mxu0 0
    %753 = vmatpush1.bf16.msra.mxu0 0
    %754 = vmatprep.subr.bf16.mxu0 0
    %755 = vmatpush1.bf16.msra.mxu0 0
    %756 = vmatprep.subr.bf16.mxu0 0
    %757 = vmatpush1.bf16.msra.mxu0 0
    %758 = vmatprep.subr.bf16.mxu0 0
    %759 = vmatpush1.bf16.msra.mxu0 %v740
    %760 = vmatprep.subr.bf16.mxu0 0
    %761 = vmatpush1.bf16.msra.mxu0 %v739
    %762 = vmatprep.subr.bf16.mxu0 0
    %763 = vmatpush2.bf16.msra.mxu0 0
    %764 = vmatprep.subr.bf16.mxu0 0
    %765 = vmatpush2.bf16.msra.mxu0 0
    %766 = vmatprep.subr.bf16.mxu0 0
    %767 = vmatpush2.bf16.msra.mxu0 0
    %768 = vmatprep.subr.bf16.mxu0 0
    %769 = vmatpush2.bf16.msra.mxu0 0
    %770 = vmatprep.subr.bf16.mxu0 0
    %771 = vmatpush2.bf16.msra.mxu0 0
    %772 = vmatprep.subr.bf16.mxu0 0
    %773 = vmatpush2.bf16.msra.mxu0 0
    %774 = vmatprep.subr.bf16.mxu0 0
    %775 = vmatpush2.bf16.msra.mxu0 0
    %776 = vmatprep.subr.bf16.mxu0 0
    %777 = vmatpush2.bf16.msra.mxu0 0
    %778 = vmatprep.mubr.bf16.mxu0 0
    %779 = vmatmul.mubr.bf16.gmra.mxu0 %v744
    %v780 = vpop.f32.mrf.mxu0
    %v781 = vadd.f32 0.0, %v780
    %v782 = vpop.f32.mrf.mxu0
    %v783 = vpop.f32.mrf.mxu0
    %v784 = vpop.f32.mrf.mxu0
    %785 = vdwg.mxu0
    %v786 = vmul.f32 %v781, 0.17677669
    %v788 = vrot.slane %v786, 2
    %v790 = vmax.f32 %v786, %v788
    %v791 = vrot.slane %v786, 4
    %v793 = vmax.f32 %v790, %v791
    %v795 = vrot.slane %v793, 6
    %v797 = vrot.slane %v793, 4
    %v799 = vsel %vm170, %v793, %v795
    %v800 = vsel %vm174, %v799, %v797
    %v801 = vsub.f32 %v786, %v800
    %v802 = vmul.f32 %v801, 1.442695
    %v803 = vpow.pop %v802
    %v805 = vrot.slane %v803, 2
    %v807 = vadd.f32 %v803, %v805
    %v808 = vrot.slane %v803, 4
    %v810 = vadd.f32 %v807, %v808
    %v811 = vrcp.pop %v810
    %v812 = vmul.f32 1.0, %v811
    %v814 = vrot.slane %v812, 6
    %v816 = vrot.slane %v812, 4
    %v818 = vsel %vm170, %v812, %v814
    %v819 = vsel %vm174, %v818, %v816
    %v820 = vmul.f32 %v803, %v819
    %v821 = vpack.c.bf16 %v820, %v820
    %v823 = vunpack.c.l.b16 %v110
    %v824 = vunpack.c.h.b16 %v110
    %v825 = vpack.c.b16 %v823, %v823
    %v826 = vpack.c.b16 %v824, %v824
    %vm827 = vcmask 39936
    %v829 = vsel %vm827, %v821, 0
    %v831 = vsel %vm170, 4294967295, 65535
    %v832 = vsel %vm172, %v831, 0
    %v834 = vand.u32 %v825, %v832
    %v837 = vand.u32 %v826, %v832
    %839 = vmatprep.subr.bf16.mxu0 0
    %840 = vmatpush1.bf16.msra.mxu0 0
    %841 = vmatprep.subr.bf16.mxu0 0
    %842 = vmatpush1.bf16.msra.mxu0 0
    %843 = vmatprep.subr.bf16.mxu0 0
    %844 = vmatpush1.bf16.msra.mxu0 0
    %845 = vmatprep.subr.bf16.mxu0 0
    %846 = vmatpush1.bf16.msra.mxu0 0
    %847 = vmatprep.subr.bf16.mxu0 0
    %848 = vmatpush1.bf16.msra.mxu0 0
    %849 = vmatprep.subr.bf16.mxu0 0
    %850 = vmatpush1.bf16.msra.mxu0 0
    %851 = vmatprep.subr.bf16.mxu0 0
    %852 = vmatpush1.bf16.msra.mxu0 0
    %853 = vmatprep.subr.bf16.mxu0 %v837
    %854 = vmatpush1.bf16.msra.mxu0 %v834
    %855 = vmatprep.subr.bf16.mxu0 0
    %856 = vmatpush2.bf16.msra.mxu0 0
    %857 = vmatprep.subr.bf16.mxu0 0
    %858 = vmatpush2.bf16.msra.mxu0 0
    %859 = vmatprep.subr.bf16.mxu0 0
    %860 = vmatpush2.bf16.msra.mxu0 0
    %861 = vmatprep.subr.bf16.mxu0 0
    %862 = vmatpush2.bf16.msra.mxu0 0
    %863 = vmatprep.subr.bf16.mxu0 0
    %864 = vmatpush2.bf16.msra.mxu0 0
    %865 = vmatprep.subr.bf16.mxu0 0
    %866 = vmatpush2.bf16.msra.mxu0 0
    %867 = vmatprep.subr.bf16.mxu0 0
    %868 = vmatpush2.bf16.msra.mxu0 0
    %869 = vmatprep.subr.bf16.mxu0 0
    %870 = vmatpush2.bf16.msra.mxu0 0
    %871 = vmatprep.mubr.bf16.mxu0 0
    %872 = vmatmul.mubr.bf16.gmra.mxu0 %v829
    %v873 = vpop.f32.mrf.mxu0
    %v874 = vadd.f32 0.0, %v873
    %v875 = vpop.f32.mrf.mxu0
    %v876 = vadd.f32 0.0, %v875
    %v877 = vpop.f32.mrf.mxu0
    %v878 = vpop.f32.mrf.mxu0
    %879 = vdwg.mxu0
    %v880 = vld [vmem:[%s16] sm:$0xff]
    %v881 = vld [vmem:[%s16 + $0x8] sm:$0xff]
    %v882 = vld [vmem:[%s16 + $0x10] sm:$0xff]
    %v883 = vld [vmem:[%s16 + $0x18] sm:$0xff]
    %v888 = vunpack.c.l.b16 %v880
    %v889 = vunpack.c.h.b16 %v880
    %v890 = vunpack.c.l.b16 %v881
    %v891 = vunpack.c.h.b16 %v881
    %v892 = vunpack.c.l.b16 %v882
    %v893 = vunpack.c.h.b16 %v882
    %v894 = vunpack.c.l.b16 %v883
    %v895 = vunpack.c.h.b16 %v883
    %v896 = vpack.c.b16 %v890, %v888
    %v897 = vpack.c.b16 %v891, %v889
    %v898 = vpack.c.b16 %v894, %v892
    %v899 = vpack.c.b16 %v895, %v893
    %904 = vmatprep.subr.bf16.mxu0 0
    %905 = vmatpush1.bf16.msra.mxu0 0
    %906 = vmatprep.subr.bf16.mxu0 0
    %907 = vmatpush1.bf16.msra.mxu0 0
    %908 = vmatprep.subr.bf16.mxu0 0
    %909 = vmatpush1.bf16.msra.mxu0 0
    %910 = vmatprep.subr.bf16.mxu0 0
    %911 = vmatpush1.bf16.msra.mxu0 0
    %912 = vmatprep.subr.bf16.mxu0 0
    %913 = vmatpush1.bf16.msra.mxu0 0
    %914 = vmatprep.subr.bf16.mxu0 0
    %915 = vmatpush1.bf16.msra.mxu0 0
    %916 = vmatprep.subr.bf16.mxu0 %v899
    %917 = vmatpush1.bf16.msra.mxu0 %v898
    %918 = vmatprep.subr.bf16.mxu0 %v897
    %919 = vmatpush1.bf16.msra.mxu0 %v896
    %920 = vmatprep.subr.bf16.mxu0 0
    %921 = vmatpush2.bf16.msra.mxu0 0
    %922 = vmatprep.subr.bf16.mxu0 0
    %923 = vmatpush2.bf16.msra.mxu0 0
    %924 = vmatprep.subr.bf16.mxu0 0
    %925 = vmatpush2.bf16.msra.mxu0 0
    %926 = vmatprep.subr.bf16.mxu0 0
    %927 = vmatpush2.bf16.msra.mxu0 0
    %928 = vmatprep.subr.bf16.mxu0 0
    %929 = vmatpush2.bf16.msra.mxu0 0
    %930 = vmatprep.subr.bf16.mxu0 0
    %931 = vmatpush2.bf16.msra.mxu0 0
    %932 = vmatprep.subr.bf16.mxu0 0
    %933 = vmatpush2.bf16.msra.mxu0 0
    %934 = vmatprep.subr.bf16.mxu0 0
    %935 = vmatpush2.bf16.msra.mxu0 0
    %936 = vmatprep.mubr.bf16.mxu0 0
    %937 = vmatmul.mubr.bf16.gmra.mxu0 %v744
    %v938 = vpop.f32.mrf.mxu0
    %v939 = vadd.f32 0.0, %v938
    %v940 = vpop.f32.mrf.mxu0
    %v941 = vadd.f32 0.0, %v940
    %v942 = vpop.f32.mrf.mxu0
    %v943 = vpop.f32.mrf.mxu0
    %944 = vdwg.mxu0
    %v945 = vmul.f32 %v874, %v939
    %v946 = vmul.f32 %v876, %v941
    %v949 = vrot.slane %v945, 2
    %v950 = vrot.slane %v946, 2
    %v953 = vadd.f32 %v945, %v949
    %v954 = vadd.f32 %v946, %v950
    %v955 = vrot.slane %v945, 4
    %v956 = vrot.slane %v946, 4
    %v959 = vadd.f32 %v953, %v955
    %v960 = vadd.f32 %v954, %v956
    %v961 = vpack.c.bf16 %v959, %v959
    %v962 = vpack.c.bf16 %v960, %v960
    %v963 = vld [vmem:[%s17] sm:$0xff]
    %v964 = vld [vmem:[%s17 + $0x8] sm:$0xf]
    %v965 = vld [vmem:[%s17 + $0xc] sm:$0xff]
    %v966 = vld [vmem:[%s17 + $0x14] sm:$0xf]
    %v967 = vld [vmem:[%s17 + $0x18] sm:$0xff]
    %v968 = vld [vmem:[%s17 + $0x20] sm:$0xf]
    %v969 = vld [vmem:[%s17 + $0x24] sm:$0xff]
    %v970 = vld [vmem:[%s17 + $0x2c] sm:$0xf]
    %v971 = vld [vmem:[%s17 + $0x30] sm:$0xff]
    %v972 = vld [vmem:[%s17 + $0x38] sm:$0xf]
    %v973 = vld [vmem:[%s17 + $0x3c] sm:$0xff]
    %v974 = vld [vmem:[%s17 + $0x44] sm:$0xf]
    %v975 = vld [vmem:[%s17 + $0x48] sm:$0xff]
    %v976 = vld [vmem:[%s17 + $0x50] sm:$0xf]
    %v977 = vld [vmem:[%s17 + $0x54] sm:$0xff]
    %v978 = vld [vmem:[%s17 + $0x5c] sm:$0xf]
    %v979 = vld [vmem:[%s17 + $0x60] sm:$0xff]
    %v980 = vld [vmem:[%s17 + $0x68] sm:$0xf]
    %v981 = vld [vmem:[%s17 + $0x6c] sm:$0xff]
    %v982 = vld [vmem:[%s17 + $0x74] sm:$0xf]
    %v983 = vld [vmem:[%s17 + $0x78] sm:$0xff]
    %v984 = vld [vmem:[%s17 + $0x80] sm:$0xf]
    %v985 = vld [vmem:[%s17 + $0x84] sm:$0xff]
    %v986 = vld [vmem:[%s17 + $0x8c] sm:$0xf]
    %v987 = vld [vmem:[%s17 + $0x90] sm:$0xff]
    %v988 = vld [vmem:[%s17 + $0x98] sm:$0xf]
    %v989 = vld [vmem:[%s17 + $0x9c] sm:$0xff]
    %v990 = vld [vmem:[%s17 + $0xa4] sm:$0xf]
    %v991 = vld [vmem:[%s17 + $0xa8] sm:$0xff]
    %v992 = vld [vmem:[%s17 + $0xb0] sm:$0xf]
    %v993 = vld [vmem:[%s17 + $0xb4] sm:$0xff]
    %v994 = vld [vmem:[%s17 + $0xbc] sm:$0xf]
    %v995 = vld [vmem:[%s17 + $0xc0] sm:$0xff]
    %v996 = vld [vmem:[%s17 + $0xc8] sm:$0xf]
    %v997 = vld [vmem:[%s17 + $0xcc] sm:$0xff]
    %v998 = vld [vmem:[%s17 + $0xd4] sm:$0xf]
    %v999 = vld [vmem:[%s17 + $0xd8] sm:$0xff]
    %v1000 = vld [vmem:[%s17 + $0xe0] sm:$0xf]
    %v1001 = vld [vmem:[%s17 + $0xe4] sm:$0xff]
    %v1002 = vld [vmem:[%s17 + $0xec] sm:$0xf]
    %v1003 = vld [vmem:[%s18] sm:$0x7]
    %v1005 = vlaneseq
    %v1006 = vshrl.u32 %v1005, 7
    %v1007 = vsub.s32 0, %v1006
    %v1008 = vrot.slane %v1003, %v1007
    %v1009 = vlaneseq
    %v1010 = vshrl.u32 %v1009, 7
    %v1011 = vsub.s32 1, %v1010
    %v1012 = vrot.slane %v1003, %v1011
    %v1013 = vlaneseq
    %v1014 = vshrl.u32 %v1013, 7
    %v1015 = vsub.s32 2, %v1014
    %v1016 = vrot.slane %v1003, %v1015
    %v1060 = vunpack.c.l.b16 %v963
    %v1061 = vunpack.c.h.b16 %v963
    %v1062 = vunpack.c.l.b16 %v964
    %v1063 = vunpack.c.l.b16 %v965
    %v1064 = vunpack.c.h.b16 %v965
    %v1065 = vunpack.c.l.b16 %v966
    %v1066 = vunpack.c.l.b16 %v967
    %v1067 = vunpack.c.h.b16 %v967
    %v1068 = vunpack.c.l.b16 %v968
    %v1069 = vunpack.c.l.b16 %v969
    %v1070 = vunpack.c.h.b16 %v969
    %v1071 = vunpack.c.l.b16 %v970
    %v1072 = vunpack.c.l.b16 %v971
    %v1073 = vunpack.c.h.b16 %v971
    %v1074 = vunpack.c.l.b16 %v972
    %v1075 = vunpack.c.l.b16 %v973
    %v1076 = vunpack.c.h.b16 %v973
    %v1077 = vunpack.c.l.b16 %v974
    %v1078 = vunpack.c.l.b16 %v975
    %v1079 = vunpack.c.h.b16 %v975
    %v1080 = vunpack.c.l.b16 %v976
    %v1081 = vunpack.c.l.b16 %v977
    %v1082 = vunpack.c.h.b16 %v977
    %v1083 = vunpack.c.l.b16 %v978
    %v1084 = vunpack.c.l.b16 %v979
    %v1085 = vunpack.c.h.b16 %v979
    %v1086 = vunpack.c.l.b16 %v980
    %v1087 = vunpack.c.l.b16 %v981
    %v1088 = vunpack.c.h.b16 %v981
    %v1089 = vunpack.c.l.b16 %v982
    %v1090 = vunpack.c.l.b16 %v983
    %v1091 = vunpack.c.h.b16 %v983
    %v1092 = vunpack.c.l.b16 %v984
    %v1093 = vunpack.c.l.b16 %v985
    %v1094 = vunpack.c.h.b16 %v985
    %v1095 = vunpack.c.l.b16 %v986
    %v1096 = vunpack.c.l.b16 %v987
    %v1097 = vunpack.c.h.b16 %v987
    %v1098 = vunpack.c.l.b16 %v988
    %v1099 = vunpack.c.l.b16 %v989
    %v1100 = vunpack.c.h.b16 %v989
    %v1101 = vunpack.c.l.b16 %v990
    %v1102 = vunpack.c.l.b16 %v991
    %v1103 = vunpack.c.h.b16 %v991
    %v1104 = vunpack.c.l.b16 %v992
    %v1105 = vunpack.c.l.b16 %v993
    %v1106 = vunpack.c.h.b16 %v993
    %v1107 = vunpack.c.l.b16 %v994
    %v1108 = vunpack.c.l.b16 %v995
    %v1109 = vunpack.c.h.b16 %v995
    %v1110 = vunpack.c.l.b16 %v996
    %v1111 = vunpack.c.l.b16 %v997
    %v1112 = vunpack.c.h.b16 %v997
    %v1113 = vunpack.c.l.b16 %v998
    %v1114 = vunpack.c.l.b16 %v999
    %v1115 = vunpack.c.h.b16 %v999
    %v1116 = vunpack.c.l.b16 %v1000
    %v1117 = vunpack.c.l.b16 %v1001
    %v1118 = vunpack.c.h.b16 %v1001
    %v1119 = vunpack.c.l.b16 %v1002
    %v1120 = vpack.c.b16 %v1063, %v1060
    %v1121 = vpack.c.b16 %v1064, %v1061
    %v1122 = vpack.c.b16 %v1065, %v1062
    %v1123 = vpack.c.b16 %v1069, %v1066
    %v1124 = vpack.c.b16 %v1070, %v1067
    %v1125 = vpack.c.b16 %v1071, %v1068
    %v1126 = vpack.c.b16 %v1075, %v1072
    %v1127 = vpack.c.b16 %v1076, %v1073
    %v1128 = vpack.c.b16 %v1077, %v1074
    %v1129 = vpack.c.b16 %v1081, %v1078
    %v1130 = vpack.c.b16 %v1082, %v1079
    %v1131 = vpack.c.b16 %v1083, %v1080
    %v1132 = vpack.c.b16 %v1087, %v1084
    %v1133 = vpack.c.b16 %v1088, %v1085
    %v1134 = vpack.c.b16 %v1089, %v1086
    %v1135 = vpack.c.b16 %v1093, %v1090
    %v1136 = vpack.c.b16 %v1094, %v1091
    %v1137 = vpack.c.b16 %v1095, %v1092
    %v1138 = vpack.c.b16 %v1099, %v1096
    %v1139 = vpack.c.b16 %v1100, %v1097
    %v1140 = vpack.c.b16 %v1101, %v1098
    %v1141 = vpack.c.b16 %v1105, %v1102
    %v1142 = vpack.c.b16 %v1106, %v1103
    %v1143 = vpack.c.b16 %v1107, %v1104
    %v1144 = vpack.c.b16 %v1111, %v1108
    %v1145 = vpack.c.b16 %v1112, %v1109
    %v1146 = vpack.c.b16 %v1113, %v1110
    %v1147 = vpack.c.b16 %v1117, %v1114
    %v1148 = vpack.c.b16 %v1118, %v1115
    %v1149 = vpack.c.b16 %v1119, %v1116
    %v1181 = vsel %vm190, %v962, 0
    %1183 = vmatprep.subr.bf16.mxu0 %v1142
    %1184 = vmatpush1.bf16.msra.mxu0 %v1141
    %1185 = vmatprep.subr.bf16.mxu0 %v1139
    %1186 = vmatpush1.bf16.msra.mxu0 %v1138
    %1187 = vmatprep.subr.bf16.mxu0 %v1136
    %1188 = vmatpush1.bf16.msra.mxu0 %v1135
    %1189 = vmatprep.subr.bf16.mxu0 %v1133
    %1190 = vmatpush1.bf16.msra.mxu0 %v1132
    %1191 = vmatprep.subr.bf16.mxu0 %v1130
    %1192 = vmatpush1.bf16.msra.mxu0 %v1129
    %1193 = vmatprep.subr.bf16.mxu0 %v1127
    %1194 = vmatpush1.bf16.msra.mxu0 %v1126
    %1195 = vmatprep.subr.bf16.mxu0 %v1124
    %1196 = vmatpush1.bf16.msra.mxu0 %v1123
    %1197 = vmatprep.subr.bf16.mxu0 %v1121
    %1198 = vmatpush1.bf16.msra.mxu0 %v1120
    %1199 = vmatprep.subr.bf16.mxu0 0
    %1200 = vmatpush2.bf16.msra.mxu0 0
    %1201 = vmatprep.subr.bf16.mxu0 0
    %1202 = vmatpush2.bf16.msra.mxu0 0
    %1203 = vmatprep.subr.bf16.mxu0 0
    %1204 = vmatpush2.bf16.msra.mxu0 0
    %1205 = vmatprep.subr.bf16.mxu0 0
    %1206 = vmatpush2.bf16.msra.mxu0 0
    %1207 = vmatprep.subr.bf16.mxu0 0
    %1208 = vmatpush2.bf16.msra.mxu0 0
    %1209 = vmatprep.subr.bf16.mxu0 0
    %1210 = vmatpush2.bf16.msra.mxu0 0
    %1211 = vmatprep.subr.bf16.mxu0 %v1148
    %1212 = vmatpush2.bf16.msra.mxu0 %v1147
    %1213 = vmatprep.subr.bf16.mxu0 %v1145
    %1214 = vmatpush2.bf16.msra.mxu0 %v1144
    %1215 = vmatprep.mubr.bf16.mxu0 %v1181
    %1216 = vmatmul.mubr.bf16.gmra.mxu0 %v961
    %v1217 = vpop.f32.mrf.mxu0
    %v1218 = vadd.f32 %v1008, %v1217
    %v1219 = vpop.f32.mrf.mxu0
    %v1220 = vadd.f32 %v1012, %v1219
    %v1221 = vpop.f32.mrf.mxu0
    %v1222 = vpop.f32.mrf.mxu0
    %1223 = vdwg.mxu0
    %1224 = vmatprep.subr.bf16.mxu0 0
    %1225 = vmatpush1.bf16.msra.mxu0 %v1143
    %1226 = vmatprep.subr.bf16.mxu0 0
    %1227 = vmatpush1.bf16.msra.mxu0 %v1140
    %1228 = vmatprep.subr.bf16.mxu0 0
    %1229 = vmatpush1.bf16.msra.mxu0 %v1137
    %1230 = vmatprep.subr.bf16.mxu0 0
    %1231 = vmatpush1.bf16.msra.mxu0 %v1134
    %1232 = vmatprep.subr.bf16.mxu0 0
    %1233 = vmatpush1.bf16.msra.mxu0 %v1131
    %1234 = vmatprep.subr.bf16.mxu0 0
    %1235 = vmatpush1.bf16.msra.mxu0 %v1128
    %1236 = vmatprep.subr.bf16.mxu0 0
    %1237 = vmatpush1.bf16.msra.mxu0 %v1125
    %1238 = vmatprep.subr.bf16.mxu0 0
    %1239 = vmatpush1.bf16.msra.mxu0 %v1122
    %1240 = vmatprep.subr.bf16.mxu0 0
    %1241 = vmatpush2.bf16.msra.mxu0 0
    %1242 = vmatprep.subr.bf16.mxu0 0
    %1243 = vmatpush2.bf16.msra.mxu0 0
    %1244 = vmatprep.subr.bf16.mxu0 0
    %1245 = vmatpush2.bf16.msra.mxu0 0
    %1246 = vmatprep.subr.bf16.mxu0 0
    %1247 = vmatpush2.bf16.msra.mxu0 0
    %1248 = vmatprep.subr.bf16.mxu0 0
    %1249 = vmatpush2.bf16.msra.mxu0 0
    %1250 = vmatprep.subr.bf16.mxu0 0
    %1251 = vmatpush2.bf16.msra.mxu0 0
    %1252 = vmatprep.subr.bf16.mxu0 0
    %1253 = vmatpush2.bf16.msra.mxu0 %v1149
    %1254 = vmatprep.subr.bf16.mxu0 0
    %1255 = vmatpush2.bf16.msra.mxu0 %v1146
    %1256 = vmatprep.mubr.bf16.mxu0 %v1181
    %1257 = vmatmul.mubr.bf16.gmra.mxu0 %v961
    %v1258 = vpop.f32.mrf.mxu0
    %v1259 = vadd.f32 %v1016, %v1258
    %v1260 = vpop.f32.mrf.mxu0
    %v1261 = vpop.f32.mrf.mxu0
    %v1262 = vpop.f32.mrf.mxu0
    %1263 = vdwg.mxu0
    %v1264 = vmax.f32 %v1218, 0.0
    %v1265 = vmax.f32 %v1220, 0.0
    %v1266 = vmax.f32 %v1259, 0.0
    %v1267 = vpack.c.bf16 %v1264, %v1264
    %v1268 = vpack.c.bf16 %v1265, %v1265
    %v1269 = vpack.c.bf16 %v1266, %v1266
    %v1270 = vld [vmem:[%s19] sm:$0xff]
    %v1271 = vld [vmem:[%s19 + $0x8] sm:$0xff]
    %v1272 = vld [vmem:[%s19 + $0x10] sm:$0xff]
    %v1273 = vld [vmem:[%s19 + $0x18] sm:$0xff]
    %v1274 = vld [vmem:[%s19 + $0x20] sm:$0xff]
    %v1275 = vld [vmem:[%s19 + $0x28] sm:$0xff]
    %v1276 = vld [vmem:[%s19 + $0x30] sm:$0xff]
    %v1277 = vld [vmem:[%s19 + $0x38] sm:$0xff]
    %v1278 = vld [vmem:[%s19 + $0x40] sm:$0xff]
    %v1279 = vld [vmem:[%s19 + $0x48] sm:$0xff]
    %v1280 = vld [vmem:[%s19 + $0x50] sm:$0xff]
    %v1281 = vld [vmem:[%s19 + $0x58] sm:$0xff]
    %v1282 = vld [vmem:[%s19 + $0x60] sm:$0xff]
    %v1283 = vld [vmem:[%s19 + $0x68] sm:$0xff]
    %v1284 = vld [vmem:[%s19 + $0x70] sm:$0xff]
    %v1285 = vld [vmem:[%s19 + $0x78] sm:$0xff]
    %v1286 = vld [vmem:[%s19 + $0x80] sm:$0xff]
    %v1287 = vld [vmem:[%s19 + $0x88] sm:$0xff]
    %v1288 = vld [vmem:[%s19 + $0x90] sm:$0xff]
    %v1289 = vld [vmem:[%s19 + $0x98] sm:$0xff]
    %v1290 = vld [vmem:[%s19 + $0xa0] sm:$0xff]
    %v1291 = vld [vmem:[%s19 + $0xa8] sm:$0xff]
    %v1292 = vld [vmem:[%s19 + $0xb0] sm:$0xff]
    %v1293 = vld [vmem:[%s19 + $0xb8] sm:$0xff]
    %v1294 = vld [vmem:[%s19 + $0xc0] sm:$0xff]
    %v1295 = vld [vmem:[%s19 + $0xc8] sm:$0xff]
    %v1296 = vld [vmem:[%s19 + $0xd0] sm:$0xff]
    %v1297 = vld [vmem:[%s19 + $0xd8] sm:$0xff]
    %v1298 = vld [vmem:[%s19 + $0xe0] sm:$0xff]
    %v1299 = vld [vmem:[%s19 + $0xe8] sm:$0xff]
    %v1300 = vld [vmem:[%s19 + $0xf0] sm:$0xff]
    %v1301 = vld [vmem:[%s19 + $0xf8] sm:$0xff]
    %v1302 = vld [vmem:[%s19 + $0x100] sm:$0xff]
    %v1303 = vld [vmem:[%s19 + $0x108] sm:$0xff]
    %v1304 = vld [vmem:[%s19 + $0x110] sm:$0xff]
    %v1305 = vld [vmem:[%s19 + $0x118] sm:$0xff]
    %v1306 = vld [vmem:[%s19 + $0x120] sm:$0xff]
    %v1307 = vld [vmem:[%s19 + $0x128] sm:$0xff]
    %v1308 = vld [vmem:[%s19 + $0x130] sm:$0xff]
    %v1309 = vld [vmem:[%s19 + $0x138] sm:$0xff]
    %v1310 = vld [vmem:[%s20] sm:$0x3]
    %v1312 = vlaneseq
    %v1313 = vshrl.u32 %v1312, 7
    %v1314 = vsub.s32 0, %v1313
    %v1315 = vrot.slane %v1310, %v1314
    %v1316 = vlaneseq
    %v1317 = vshrl.u32 %v1316, 7
    %v1318 = vsub.s32 1, %v1317
    %v1319 = vrot.slane %v1310, %v1318
    %v1362 = vunpack.c.l.b16 %v1270
    %v1363 = vunpack.c.h.b16 %v1270
    %v1364 = vunpack.c.l.b16 %v1271
    %v1365 = vunpack.c.h.b16 %v1271
    %v1366 = vunpack.c.l.b16 %v1272
    %v1367 = vunpack.c.h.b16 %v1272
    %v1368 = vunpack.c.l.b16 %v1273
    %v1369 = vunpack.c.h.b16 %v1273
    %v1370 = vunpack.c.l.b16 %v1274
    %v1371 = vunpack.c.h.b16 %v1274
    %v1372 = vunpack.c.l.b16 %v1275
    %v1373 = vunpack.c.h.b16 %v1275
    %v1374 = vunpack.c.l.b16 %v1276
    %v1375 = vunpack.c.h.b16 %v1276
    %v1376 = vunpack.c.l.b16 %v1277
    %v1377 = vunpack.c.h.b16 %v1277
    %v1378 = vunpack.c.l.b16 %v1278
    %v1379 = vunpack.c.h.b16 %v1278
    %v1380 = vunpack.c.l.b16 %v1279
    %v1381 = vunpack.c.h.b16 %v1279
    %v1382 = vunpack.c.l.b16 %v1280
    %v1383 = vunpack.c.h.b16 %v1280
    %v1384 = vunpack.c.l.b16 %v1281
    %v1385 = vunpack.c.h.b16 %v1281
    %v1386 = vunpack.c.l.b16 %v1282
    %v1387 = vunpack.c.h.b16 %v1282
    %v1388 = vunpack.c.l.b16 %v1283
    %v1389 = vunpack.c.h.b16 %v1283
    %v1390 = vunpack.c.l.b16 %v1284
    %v1391 = vunpack.c.h.b16 %v1284
    %v1392 = vunpack.c.l.b16 %v1285
    %v1393 = vunpack.c.h.b16 %v1285
    %v1394 = vunpack.c.l.b16 %v1286
    %v1395 = vunpack.c.h.b16 %v1286
    %v1396 = vunpack.c.l.b16 %v1287
    %v1397 = vunpack.c.h.b16 %v1287
    %v1398 = vunpack.c.l.b16 %v1288
    %v1399 = vunpack.c.h.b16 %v1288
    %v1400 = vunpack.c.l.b16 %v1289
    %v1401 = vunpack.c.h.b16 %v1289
    %v1402 = vunpack.c.l.b16 %v1290
    %v1403 = vunpack.c.h.b16 %v1290
    %v1404 = vunpack.c.l.b16 %v1291
    %v1405 = vunpack.c.h.b16 %v1291
    %v1406 = vunpack.c.l.b16 %v1292
    %v1407 = vunpack.c.h.b16 %v1292
    %v1408 = vunpack.c.l.b16 %v1293
    %v1409 = vunpack.c.h.b16 %v1293
    %v1410 = vunpack.c.l.b16 %v1294
    %v1411 = vunpack.c.h.b16 %v1294
    %v1412 = vunpack.c.l.b16 %v1295
    %v1413 = vunpack.c.h.b16 %v1295
    %v1414 = vunpack.c.l.b16 %v1296
    %v1415 = vunpack.c.h.b16 %v1296
    %v1416 = vunpack.c.l.b16 %v1297
    %v1417 = vunpack.c.h.b16 %v1297
    %v1418 = vunpack.c.l.b16 %v1298
    %v1419 = vunpack.c.h.b16 %v1298
    %v1420 = vunpack.c.l.b16 %v1299
    %v1421 = vunpack.c.h.b16 %v1299
    %v1422 = vunpack.c.l.b16 %v1300
    %v1423 = vunpack.c.h.b16 %v1300
    %v1424 = vunpack.c.l.b16 %v1301
    %v1425 = vunpack.c.h.b16 %v1301
    %v1426 = vunpack.c.l.b16 %v1302
    %v1427 = vunpack.c.h.b16 %v1302
    %v1428 = vunpack.c.l.b16 %v1303
    %v1429 = vunpack.c.h.b16 %v1303
    %v1430 = vunpack.c.l.b16 %v1304
    %v1431 = vunpack.c.h.b16 %v1304
    %v1432 = vunpack.c.l.b16 %v1305
    %v1433 = vunpack.c.h.b16 %v1305
    %v1434 = vunpack.c.l.b16 %v1306
    %v1435 = vunpack.c.h.b16 %v1306
    %v1436 = vunpack.c.l.b16 %v1307
    %v1437 = vunpack.c.h.b16 %v1307
    %v1438 = vunpack.c.l.b16 %v1308
    %v1439 = vunpack.c.h.b16 %v1308
    %v1440 = vunpack.c.l.b16 %v1309
    %v1441 = vunpack.c.h.b16 %v1309
    %v1442 = vpack.c.b16 %v1364, %v1362
    %v1443 = vpack.c.b16 %v1365, %v1363
    %v1444 = vpack.c.b16 %v1368, %v1366
    %v1445 = vpack.c.b16 %v1369, %v1367
    %v1446 = vpack.c.b16 %v1372, %v1370
    %v1447 = vpack.c.b16 %v1373, %v1371
    %v1448 = vpack.c.b16 %v1376, %v1374
    %v1449 = vpack.c.b16 %v1377, %v1375
    %v1450 = vpack.c.b16 %v1380, %v1378
    %v1451 = vpack.c.b16 %v1381, %v1379
    %v1452 = vpack.c.b16 %v1384, %v1382
    %v1453 = vpack.c.b16 %v1385, %v1383
    %v1454 = vpack.c.b16 %v1388, %v1386
    %v1455 = vpack.c.b16 %v1389, %v1387
    %v1456 = vpack.c.b16 %v1392, %v1390
    %v1457 = vpack.c.b16 %v1393, %v1391
    %v1458 = vpack.c.b16 %v1396, %v1394
    %v1459 = vpack.c.b16 %v1397, %v1395
    %v1460 = vpack.c.b16 %v1400, %v1398
    %v1461 = vpack.c.b16 %v1401, %v1399
    %v1462 = vpack.c.b16 %v1404, %v1402
    %v1463 = vpack.c.b16 %v1405, %v1403
    %v1464 = vpack.c.b16 %v1408, %v1406
    %v1465 = vpack.c.b16 %v1409, %v1407
    %v1466 = vpack.c.b16 %v1412, %v1410
    %v1467 = vpack.c.b16 %v1413, %v1411
    %v1468 = vpack.c.b16 %v1416, %v1414
    %v1469 = vpack.c.b16 %v1417, %v1415
    %v1470 = vpack.c.b16 %v1420, %v1418
    %v1471 = vpack.c.b16 %v1421, %v1419
    %v1472 = vpack.c.b16 %v1424, %v1422
    %v1473 = vpack.c.b16 %v1425, %v1423
    %v1474 = vpack.c.b16 %v1428, %v1426
    %v1475 = vpack.c.b16 %v1429, %v1427
    %v1476 = vpack.c.b16 %v1432, %v1430
    %v1477 = vpack.c.b16 %v1433, %v1431
    %v1478 = vpack.c.b16 %v1436, %v1434
    %v1479 = vpack.c.b16 %v1437, %v1435
    %v1480 = vpack.c.b16 %v1440, %v1438
    %v1481 = vpack.c.b16 %v1441, %v1439
    %v1523 = vsel %vm269, %v1269, 0
    %1525 = vmatprep.subr.bf16.mxu0 %v1457
    %1526 = vmatpush1.bf16.msra.mxu0 %v1456
    %1527 = vmatprep.subr.bf16.mxu0 %v1455
    %1528 = vmatpush1.bf16.msra.mxu0 %v1454
    %1529 = vmatprep.subr.bf16.mxu0 %v1453
    %1530 = vmatpush1.bf16.msra.mxu0 %v1452
    %1531 = vmatprep.subr.bf16.mxu0 %v1451
    %1532 = vmatpush1.bf16.msra.mxu0 %v1450
    %1533 = vmatprep.subr.bf16.mxu0 %v1449
    %1534 = vmatpush1.bf16.msra.mxu0 %v1448
    %1535 = vmatprep.subr.bf16.mxu0 %v1447
    %1536 = vmatpush1.bf16.msra.mxu0 %v1446
    %1537 = vmatprep.subr.bf16.mxu0 %v1445
    %1538 = vmatpush1.bf16.msra.mxu0 %v1444
    %1539 = vmatprep.subr.bf16.mxu0 %v1443
    %1540 = vmatpush1.bf16.msra.mxu0 %v1442
    %1541 = vmatprep.subr.bf16.mxu0 %v1473
    %1542 = vmatpush2.bf16.msra.mxu0 %v1472
    %1543 = vmatprep.subr.bf16.mxu0 %v1471
    %1544 = vmatpush2.bf16.msra.mxu0 %v1470
    %1545 = vmatprep.subr.bf16.mxu0 %v1469
    %1546 = vmatpush2.bf16.msra.mxu0 %v1468
    %1547 = vmatprep.subr.bf16.mxu0 %v1467
    %1548 = vmatpush2.bf16.msra.mxu0 %v1466
    %1549 = vmatprep.subr.bf16.mxu0 %v1465
    %1550 = vmatpush2.bf16.msra.mxu0 %v1464
    %1551 = vmatprep.subr.bf16.mxu0 %v1463
    %1552 = vmatpush2.bf16.msra.mxu0 %v1462
    %1553 = vmatprep.subr.bf16.mxu0 %v1461
    %1554 = vmatpush2.bf16.msra.mxu0 %v1460
    %1555 = vmatprep.subr.bf16.mxu0 %v1459
    %1556 = vmatpush2.bf16.msra.mxu0 %v1458
    %1557 = vmatprep.mubr.bf16.mxu0 %v1268
    %1558 = vmatmul.mubr.bf16.gmra.mxu0 %v1267
    %v1559 = vpop.f32.mrf.mxu0
    %v1560 = vadd.f32 %v1315, %v1559
    %v1561 = vpop.f32.mrf.mxu0
    %v1562 = vadd.f32 %v1319, %v1561
    %v1563 = vpop.f32.mrf.mxu0
    %v1564 = vpop.f32.mrf.mxu0
    %1565 = vdwg.mxu0
    %1566 = vmatprep.subr.bf16.mxu0 0
    %1567 = vmatpush1.bf16.msra.mxu0 0
    %1568 = vmatprep.subr.bf16.mxu0 0
    %1569 = vmatpush1.bf16.msra.mxu0 0
    %1570 = vmatprep.subr.bf16.mxu0 0
    %1571 = vmatpush1.bf16.msra.mxu0 0
    %1572 = vmatprep.subr.bf16.mxu0 0
    %1573 = vmatpush1.bf16.msra.mxu0 0
    %1574 = vmatprep.subr.bf16.mxu0 %v1481
    %1575 = vmatpush1.bf16.msra.mxu0 %v1480
    %1576 = vmatprep.subr.bf16.mxu0 %v1479
    %1577 = vmatpush1.bf16.msra.mxu0 %v1478
    %1578 = vmatprep.subr.bf16.mxu0 %v1477
    %1579 = vmatpush1.bf16.msra.mxu0 %v1476
    %1580 = vmatprep.subr.bf16.mxu0 %v1475
    %1581 = vmatpush1.bf16.msra.mxu0 %v1474
    %1582 = vmatprep.subr.bf16.mxu0 0
    %1583 = vmatpush2.bf16.msra.mxu0 0
    %1584 = vmatprep.subr.bf16.mxu0 0
    %1585 = vmatpush2.bf16.msra.mxu0 0
    %1586 = vmatprep.subr.bf16.mxu0 0
    %1587 = vmatpush2.bf16.msra.mxu0 0
    %1588 = vmatprep.subr.bf16.mxu0 0
    %1589 = vmatpush2.bf16.msra.mxu0 0
    %1590 = vmatprep.subr.bf16.mxu0 0
    %1591 = vmatpush2.bf16.msra.mxu0 0
    %1592 = vmatprep.subr.bf16.mxu0 0
    %1593 = vmatpush2.bf16.msra.mxu0 0
    %1594 = vmatprep.subr.bf16.mxu0 0
    %1595 = vmatpush2.bf16.msra.mxu0 0
    %1596 = vmatprep.subr.bf16.mxu0 0
    %1597 = vmatpush2.bf16.msra.mxu0 0
    %1598 = vmatprep.mubr.bf16.mxu0 0
    %1599 = vmatmul.mubr.bf16.gmra.mxu0 %v1523
    %v1600 = vpop.f32.mrf.mxu0
    %v1601 = vadd.f32 %v1560, %v1600
    %v1602 = vpop.f32.mrf.mxu0
    %v1603 = vadd.f32 %v1562, %v1602
    %v1604 = vpop.f32.mrf.mxu0
    %v1605 = vpop.f32.mrf.mxu0
    %1606 = vdwg.mxu0
    %v1607 = vmax.f32 %v1601, 0.0
    %v1608 = vmax.f32 %v1603, 0.0
    %v1609 = vpack.c.bf16 %v1607, %v1607
    %v1610 = vpack.c.bf16 %v1608, %v1608
    %v1611 = vld [vmem:[%s21] sm:$0xff]
    %v1612 = vld [vmem:[%s21 + $0x8] sm:$0xff]
    %v1613 = vld [vmem:[%s21 + $0x10] sm:$0xff]
    %v1614 = vld [vmem:[%s21 + $0x18] sm:$0xff]
    %v1615 = vld [vmem:[%s21 + $0x20] sm:$0xff]
    %v1616 = vld [vmem:[%s21 + $0x28] sm:$0xff]
    %v1617 = vld [vmem:[%s21 + $0x30] sm:$0xff]
    %v1618 = vld [vmem:[%s21 + $0x38] sm:$0xff]
    %v1619 = vld [vmem:[%s21 + $0x40] sm:$0xff]
    %v1620 = vld [vmem:[%s21 + $0x48] sm:$0xff]
    %v1621 = vld [vmem:[%s21 + $0x50] sm:$0xff]
    %v1622 = vld [vmem:[%s21 + $0x58] sm:$0xff]
    %v1623 = vld [vmem:[%s21 + $0x60] sm:$0xff]
    %v1624 = vld [vmem:[%s21 + $0x68] sm:$0xff]
    %v1625 = vld [vmem:[%s21 + $0x70] sm:$0xff]
    %v1626 = vld [vmem:[%s21 + $0x78] sm:$0xff]
    %v1627 = vld [vmem:[%s21 + $0x80] sm:$0xff]
    %v1628 = vld [vmem:[%s21 + $0x88] sm:$0xff]
    %v1629 = vld [vmem:[%s21 + $0x90] sm:$0xff]
    %v1630 = vld [vmem:[%s21 + $0x98] sm:$0xff]
    %v1631 = vld [vmem:[%s22] sm:$0x3]
    %v1633 = vlaneseq
    %v1634 = vshrl.u32 %v1633, 7
    %v1635 = vsub.s32 0, %v1634
    %v1636 = vrot.slane %v1631, %v1635
    %v1637 = vlaneseq
    %v1638 = vshrl.u32 %v1637, 7
    %v1639 = vsub.s32 1, %v1638
    %v1640 = vrot.slane %v1631, %v1639
    %v1663 = vunpack.c.l.b16 %v1611
    %v1664 = vunpack.c.h.b16 %v1611
    %v1665 = vunpack.c.l.b16 %v1612
    %v1666 = vunpack.c.h.b16 %v1612
    %v1667 = vunpack.c.l.b16 %v1613
    %v1668 = vunpack.c.h.b16 %v1613
    %v1669 = vunpack.c.l.b16 %v1614
    %v1670 = vunpack.c.h.b16 %v1614
    %v1671 = vunpack.c.l.b16 %v1615
    %v1672 = vunpack.c.h.b16 %v1615
    %v1673 = vunpack.c.l.b16 %v1616
    %v1674 = vunpack.c.h.b16 %v1616
    %v1675 = vunpack.c.l.b16 %v1617
    %v1676 = vunpack.c.h.b16 %v1617
    %v1677 = vunpack.c.l.b16 %v1618
    %v1678 = vunpack.c.h.b16 %v1618
    %v1679 = vunpack.c.l.b16 %v1619
    %v1680 = vunpack.c.h.b16 %v1619
    %v1681 = vunpack.c.l.b16 %v1620
    %v1682 = vunpack.c.h.b16 %v1620
    %v1683 = vunpack.c.l.b16 %v1621
    %v1684 = vunpack.c.h.b16 %v1621
    %v1685 = vunpack.c.l.b16 %v1622
    %v1686 = vunpack.c.h.b16 %v1622
    %v1687 = vunpack.c.l.b16 %v1623
    %v1688 = vunpack.c.h.b16 %v1623
    %v1689 = vunpack.c.l.b16 %v1624
    %v1690 = vunpack.c.h.b16 %v1624
    %v1691 = vunpack.c.l.b16 %v1625
    %v1692 = vunpack.c.h.b16 %v1625
    %v1693 = vunpack.c.l.b16 %v1626
    %v1694 = vunpack.c.h.b16 %v1626
    %v1695 = vunpack.c.l.b16 %v1627
    %v1696 = vunpack.c.h.b16 %v1627
    %v1697 = vunpack.c.l.b16 %v1628
    %v1698 = vunpack.c.h.b16 %v1628
    %v1699 = vunpack.c.l.b16 %v1629
    %v1700 = vunpack.c.h.b16 %v1629
    %v1701 = vunpack.c.l.b16 %v1630
    %v1702 = vunpack.c.h.b16 %v1630
    %v1703 = vpack.c.b16 %v1665, %v1663
    %v1704 = vpack.c.b16 %v1666, %v1664
    %v1705 = vpack.c.b16 %v1669, %v1667
    %v1706 = vpack.c.b16 %v1670, %v1668
    %v1707 = vpack.c.b16 %v1673, %v1671
    %v1708 = vpack.c.b16 %v1674, %v1672
    %v1709 = vpack.c.b16 %v1677, %v1675
    %v1710 = vpack.c.b16 %v1678, %v1676
    %v1711 = vpack.c.b16 %v1681, %v1679
    %v1712 = vpack.c.b16 %v1682, %v1680
    %v1713 = vpack.c.b16 %v1685, %v1683
    %v1714 = vpack.c.b16 %v1686, %v1684
    %v1715 = vpack.c.b16 %v1689, %v1687
    %v1716 = vpack.c.b16 %v1690, %v1688
    %v1717 = vpack.c.b16 %v1693, %v1691
    %v1718 = vpack.c.b16 %v1694, %v1692
    %v1719 = vpack.c.b16 %v1697, %v1695
    %v1720 = vpack.c.b16 %v1698, %v1696
    %v1721 = vpack.c.b16 %v1701, %v1699
    %v1722 = vpack.c.b16 %v1702, %v1700
    %v1744 = vsel %vm190, %v1610, 0
    %1746 = vmatprep.subr.bf16.mxu0 %v1718
    %1747 = vmatpush1.bf16.msra.mxu0 %v1717
    %1748 = vmatprep.subr.bf16.mxu0 %v1716
    %1749 = vmatpush1.bf16.msra.mxu0 %v1715
    %1750 = vmatprep.subr.bf16.mxu0 %v1714
    %1751 = vmatpush1.bf16.msra.mxu0 %v1713
    %1752 = vmatprep.subr.bf16.mxu0 %v1712
    %1753 = vmatpush1.bf16.msra.mxu0 %v1711
    %1754 = vmatprep.subr.bf16.mxu0 %v1710
    %1755 = vmatpush1.bf16.msra.mxu0 %v1709
    %1756 = vmatprep.subr.bf16.mxu0 %v1708
    %1757 = vmatpush1.bf16.msra.mxu0 %v1707
    %1758 = vmatprep.subr.bf16.mxu0 %v1706
    %1759 = vmatpush1.bf16.msra.mxu0 %v1705
    %1760 = vmatprep.subr.bf16.mxu0 %v1704
    %1761 = vmatpush1.bf16.msra.mxu0 %v1703
    %1762 = vmatprep.subr.bf16.mxu0 0
    %1763 = vmatpush2.bf16.msra.mxu0 0
    %1764 = vmatprep.subr.bf16.mxu0 0
    %1765 = vmatpush2.bf16.msra.mxu0 0
    %1766 = vmatprep.subr.bf16.mxu0 0
    %1767 = vmatpush2.bf16.msra.mxu0 0
    %1768 = vmatprep.subr.bf16.mxu0 0
    %1769 = vmatpush2.bf16.msra.mxu0 0
    %1770 = vmatprep.subr.bf16.mxu0 0
    %1771 = vmatpush2.bf16.msra.mxu0 0
    %1772 = vmatprep.subr.bf16.mxu0 0
    %1773 = vmatpush2.bf16.msra.mxu0 0
    %1774 = vmatprep.subr.bf16.mxu0 %v1722
    %1775 = vmatpush2.bf16.msra.mxu0 %v1721
    %1776 = vmatprep.subr.bf16.mxu0 %v1720
    %1777 = vmatpush2.bf16.msra.mxu0 %v1719
    %1778 = vmatprep.mubr.bf16.mxu0 %v1744
    %1779 = vmatmul.mubr.bf16.gmra.mxu0 %v1609
    %v1780 = vpop.f32.mrf.mxu0
    %v1781 = vadd.f32 %v1636, %v1780
    %v1782 = vpop.f32.mrf.mxu0
    %v1783 = vadd.f32 %v1640, %v1782
    %v1784 = vpop.f32.mrf.mxu0
    %v1785 = vpop.f32.mrf.mxu0
    %1786 = vdwg.mxu0
    %v1787 = vpack.c.bf16 %v730, %v730
    %v1789 = vsel %vm190, %v1787, 0
    %1791 = vmatprep.subr.bf16.mxu0 0
    %1792 = vmatpush1.bf16.msra.mxu0 0
    %1793 = vmatprep.subr.bf16.mxu0 0
    %1794 = vmatpush1.bf16.msra.mxu0 0
    %1795 = vmatprep.subr.bf16.mxu0 0
    %1796 = vmatpush1.bf16.msra.mxu0 0
    %1797 = vmatprep.subr.bf16.mxu0 0
    %1798 = vmatpush1.bf16.msra.mxu0 0
    %1799 = vmatprep.subr.bf16.mxu0 0
    %1800 = vmatpush1.bf16.msra.mxu0 0
    %1801 = vmatprep.subr.bf16.mxu0 0
    %1802 = vmatpush1.bf16.msra.mxu0 0
    %1803 = vmatprep.subr.bf16.mxu0 0
    %1804 = vmatpush1.bf16.msra.mxu0 %v740
    %1805 = vmatprep.subr.bf16.mxu0 0
    %1806 = vmatpush1.bf16.msra.mxu0 %v739
    %1807 = vmatprep.subr.bf16.mxu0 0
    %1808 = vmatpush2.bf16.msra.mxu0 0
    %1809 = vmatprep.subr.bf16.mxu0 0
    %1810 = vmatpush2.bf16.msra.mxu0 0
    %1811 = vmatprep.subr.bf16.mxu0 0
    %1812 = vmatpush2.bf16.msra.mxu0 0
    %1813 = vmatprep.subr.bf16.mxu0 0
    %1814 = vmatpush2.bf16.msra.mxu0 0
    %1815 = vmatprep.subr.bf16.mxu0 0
    %1816 = vmatpush2.bf16.msra.mxu0 0
    %1817 = vmatprep.subr.bf16.mxu0 0
    %1818 = vmatpush2.bf16.msra.mxu0 0
    %1819 = vmatprep.subr.bf16.mxu0 0
    %1820 = vmatpush2.bf16.msra.mxu0 0
    %1821 = vmatprep.subr.bf16.mxu0 0
    %1822 = vmatpush2.bf16.msra.mxu0 0
    %1823 = vmatprep.mubr.bf16.mxu0 0
    %1824 = vmatmul.mubr.bf16.gmra.mxu0 %v1789
    %v1825 = vpop.f32.mrf.mxu0
    %v1826 = vadd.f32 0.0, %v1825
    %v1827 = vpop.f32.mrf.mxu0
    %v1828 = vpop.f32.mrf.mxu0
    %v1829 = vpop.f32.mrf.mxu0
    %1830 = vdwg.mxu0
    %v1831 = vmul.f32 %v1826, 0.17677669
    %v1832 = vld [vmem:[%s15] sm:$0xf]
    %v1833 = vadd.f32 %v1831, %v1832
    %vm1834 = vcmask 35840
    %v1835 = vsel %vm1834, %v1833, -inf
    %1836 = vmax.xlane.f32.xlu0 %v1835
    %v1837 = vpop.xlane.xlu0 %1836
    %v1838 = vsub.f32 %v1833, %v1837
    %v1839 = vmul.f32 %v1838, 1.442695
    %v1840 = vpow.pop %v1839
    %v1841 = vsel %vm1834, %v1840, 0.0
    %1842 = vadd.xlane.f32.xlu0 %v1841
    %v1843 = vpop.xlane.xlu0 %1842
    %v1844 = vrcp.pop %v1843
    %v1845 = vmul.f32 %v1840, %v1844
    %v1846 = vpack.c.bf16 %v1845, %v1845
    %v1848 = vsel %vm827, %v1846, 0
    %1850 = vmatprep.subr.bf16.mxu0 0
    %1851 = vmatpush1.bf16.msra.mxu0 0
    %1852 = vmatprep.subr.bf16.mxu0 0
    %1853 = vmatpush1.bf16.msra.mxu0 0
    %1854 = vmatprep.subr.bf16.mxu0 0
    %1855 = vmatpush1.bf16.msra.mxu0 0
    %1856 = vmatprep.subr.bf16.mxu0 0
    %1857 = vmatpush1.bf16.msra.mxu0 0
    %1858 = vmatprep.subr.bf16.mxu0 0
    %1859 = vmatpush1.bf16.msra.mxu0 0
    %1860 = vmatprep.subr.bf16.mxu0 0
    %1861 = vmatpush1.bf16.msra.mxu0 0
    %1862 = vmatprep.subr.bf16.mxu0 0
    %1863 = vmatpush1.bf16.msra.mxu0 0
    %1864 = vmatprep.subr.bf16.mxu0 %v837
    %1865 = vmatpush1.bf16.msra.mxu0 %v834
    %1866 = vmatprep.subr.bf16.mxu0 0
    %1867 = vmatpush2.bf16.msra.mxu0 0
    %1868 = vmatprep.subr.bf16.mxu0 0
    %1869 = vmatpush2.bf16.msra.mxu0 0
    %1870 = vmatprep.subr.bf16.mxu0 0
    %1871 = vmatpush2.bf16.msra.mxu0 0
    %1872 = vmatprep.subr.bf16.mxu0 0
    %1873 = vmatpush2.bf16.msra.mxu0 0
    %1874 = vmatprep.subr.bf16.mxu0 0
    %1875 = vmatpush2.bf16.msra.mxu0 0
    %1876 = vmatprep.subr.bf16.mxu0 0
    %1877 = vmatpush2.bf16.msra.mxu0 0
    %1878 = vmatprep.subr.bf16.mxu0 0
    %1879 = vmatpush2.bf16.msra.mxu0 0
    %1880 = vmatprep.subr.bf16.mxu0 0
    %1881 = vmatpush2.bf16.msra.mxu0 0
    %1882 = vmatprep.mubr.bf16.mxu0 0
    %1883 = vmatmul.mubr.bf16.gmra.mxu0 %v1848
    %v1884 = vpop.f32.mrf.mxu0
    %v1885 = vadd.f32 0.0, %v1884
    %v1886 = vpop.f32.mrf.mxu0
    %v1887 = vadd.f32 0.0, %v1886
    %v1888 = vpop.f32.mrf.mxu0
    %v1889 = vpop.f32.mrf.mxu0
    %1890 = vdwg.mxu0
    %v1893 = vrot.slane %v1781, 6
    %v1894 = vrot.slane %v1783, 6
    %v1897 = vsel %vm170, %v1781, %v1893
    %v1898 = vsel %vm170, %v1783, %v1894
    %v1899 = vmul.f32 %v1885, %v1897
    %v1900 = vmul.f32 %v1887, %v1898
    %v1901 = vpack.c.bf16 %v1899, %v1899
    %v1902 = vpack.c.bf16 %v1900, %v1900
    %v1923 = vunpack.c.l.b16 %v111
    %v1924 = vunpack.c.l.b16 %v112
    %v1925 = vunpack.c.l.b16 %v113
    %v1926 = vunpack.c.l.b16 %v114
    %v1927 = vunpack.c.l.b16 %v115
    %v1928 = vunpack.c.l.b16 %v116
    %v1929 = vunpack.c.l.b16 %v117
    %v1930 = vunpack.c.l.b16 %v118
    %v1931 = vunpack.c.l.b16 %v119
    %v1932 = vunpack.c.l.b16 %v120
    %v1933 = vunpack.c.l.b16 %v121
    %v1934 = vunpack.c.l.b16 %v122
    %v1935 = vunpack.c.l.b16 %v123
    %v1936 = vunpack.c.l.b16 %v124
    %v1937 = vunpack.c.l.b16 %v125
    %v1938 = vunpack.c.l.b16 %v126
    %v1939 = vunpack.c.l.b16 %v127
    %v1940 = vunpack.c.l.b16 %v128
    %v1941 = vunpack.c.l.b16 %v129
    %v1942 = vunpack.c.l.b16 %v130
    %v1943 = vpack.c.b16 %v1924, %v1923
    %v1944 = vpack.c.b16 %v1926, %v1925
    %v1945 = vpack.c.b16 %v1928, %v1927
    %v1946 = vpack.c.b16 %v1930, %v1929
    %v1947 = vpack.c.b16 %v1932, %v1931
    %v1948 = vpack.c.b16 %v1934, %v1933
    %v1949 = vpack.c.b16 %v1936, %v1935
    %v1950 = vpack.c.b16 %v1938, %v1937
    %v1951 = vpack.c.b16 %v1940, %v1939
    %v1952 = vpack.c.b16 %v1942, %v1941
    %v1964 = vsel %vm190, %v1902, 0
    %1966 = vmatprep.subr.bf16.mxu0 0
    %1967 = vmatpush1.bf16.msra.mxu0 %v1950
    %1968 = vmatprep.subr.bf16.mxu0 0
    %1969 = vmatpush1.bf16.msra.mxu0 %v1949
    %1970 = vmatprep.subr.bf16.mxu0 0
    %1971 = vmatpush1.bf16.msra.mxu0 %v1948
    %1972 = vmatprep.subr.bf16.mxu0 0
    %1973 = vmatpush1.bf16.msra.mxu0 %v1947
    %1974 = vmatprep.subr.bf16.mxu0 0
    %1975 = vmatpush1.bf16.msra.mxu0 %v1946
    %1976 = vmatprep.subr.bf16.mxu0 0
    %1977 = vmatpush1.bf16.msra.mxu0 %v1945
    %1978 = vmatprep.subr.bf16.mxu0 0
    %1979 = vmatpush1.bf16.msra.mxu0 %v1944
    %1980 = vmatprep.subr.bf16.mxu0 0
    %1981 = vmatpush1.bf16.msra.mxu0 %v1943
    %1982 = vmatprep.subr.bf16.mxu0 0
    %1983 = vmatpush2.bf16.msra.mxu0 0
    %1984 = vmatprep.subr.bf16.mxu0 0
    %1985 = vmatpush2.bf16.msra.mxu0 0
    %1986 = vmatprep.subr.bf16.mxu0 0
    %1987 = vmatpush2.bf16.msra.mxu0 0
    %1988 = vmatprep.subr.bf16.mxu0 0
    %1989 = vmatpush2.bf16.msra.mxu0 0
    %1990 = vmatprep.subr.bf16.mxu0 0
    %1991 = vmatpush2.bf16.msra.mxu0 0
    %1992 = vmatprep.subr.bf16.mxu0 0
    %1993 = vmatpush2.bf16.msra.mxu0 0
    %1994 = vmatprep.subr.bf16.mxu0 0
    %1995 = vmatpush2.bf16.msra.mxu0 %v1952
    %1996 = vmatprep.subr.bf16.mxu0 0
    %1997 = vmatpush2.bf16.msra.mxu0 %v1951
    %1998 = vmatprep.mubr.bf16.mxu0 %v1964
    %1999 = vmatmul.mubr.bf16.gmra.mxu0 %v1901
    %v2000 = vpop.f32.mrf.mxu0
    %v2001 = vadd.f32 0.0, %v2000
    %v2002 = vpop.f32.mrf.mxu0
    %v2003 = vpop.f32.mrf.mxu0
    %v2004 = vpop.f32.mrf.mxu0
    %2005 = vdwg.mxu0
    %v2006 = vmul.f32 %v2001, %v654
    %vm2007 = vcmask 257024
    %v2008 = vsel %vm2007, %v2006, 0.0
    %2009 = vadd.xlane.f32.xlu0 %v2008
    %v2010 = vpop.xlane.xlu0 %2009
    %2012 = vrot.lane.b32.xlu0 %v1845, 1
    %v2013 = vpop.permute.xlu0 %2012
    %vm2015 = vcmask 7168
    %v2016 = vsel %vm2015, %v2010, %v2013
    %vm2017 = vcmask 48128
    %v2018 = vsel %vm2017, %v2016, 0.0
    %2019 = vst [vmem:[%s25] sm:$0xf] %v2018
    // Predicated region
    $region110: #{mvke_forward.1} parent=1 // pred_check
      _
    $region111: #{mvke_forward.1} parent=1 // pred_check_branch
      %2021 = sbr.rel (0) target = $region113
    $region112: #{mvke_forward.1} parent=1 // pred_region
      _
    $region113: #{mvke_forward.1} parent=1 // pred_fallthru
      _
    // Predicated region
    $region114: #{mvke_forward.1} parent=1 // pred_check
      _
    $region115: #{mvke_forward.1} parent=1 // pred_check_branch
      %2023 = sbr.rel (0) target = $region117
    $region116: #{mvke_forward.1} parent=1 // pred_region
      _
    $region117: #{mvke_forward.1} parent=1 // pred_fallthru
      _
    %2024 = vsyncpa [#allocation3], 1
    %2025 = vsyncpa [#allocation5], 1

</llo_original>
